<compile_context>
chip_gen: v7x
topology: tpu7x:2x2x1
jax: 0.10.0
libtpu: 0.0.40
codegen_flags: <defaults>
</compile_context>

<pallas_src>
import functools

import jax
import jax.numpy as jnp
from jax import lax
from jax.experimental import pallas as pl
from jax.experimental.pallas import tpu as pltpu


_EPS = 1e-5          # torch.nn.LayerNorm default
_NEG_INF = -1e9


# ---------------------------------------------------------------------------
# small helpers
# ---------------------------------------------------------------------------

def _row_tile(m, max_tile=512):
    """Largest multiple-of-8 tile <= max_tile dividing m (prefers >=2 grid steps)."""
    if m % 8 != 0:
        return m
    best = 8
    t = 8
    lim = min(max_tile, m)
    while t <= lim:
        if m % t == 0:
            best = t
        t += 8
    # v7x has 2 TensorCores: try to give a parallel grid at least 2 steps.
    if best == m and m >= 16 and (m // 2) % 8 == 0 and (m // 2) <= max_tile:
        best = m // 2
    return best


def _lane_tile(n, max_tile=512):
    """Largest multiple-of-128 tile <= max_tile dividing n, else full n."""
    if n % 128 != 0:
        return n
    best = 128
    t = 128
    lim = min(max_tile, n)
    while t <= lim:
        if n % t == 0:
            best = t
        t += 128
    return best


def _cparams(sems, block_bytes):
    """CompilerParams with a VMEM limit sized from the resident block bytes."""
    vmem = int(2.5 * block_bytes) + (4 << 20)       # double-buffering + headroom
    vmem = max(32 << 20, min(vmem, 64 << 20))       # 64 MiB = v7x physical VMEM
    return pltpu.CompilerParams(dimension_semantics=sems, vmem_limit_bytes=vmem)


def _ln_f32(x32, g, b):
    """LayerNorm over the last dim, computed in f32. g/b are [1, D]."""
    g = g.astype(jnp.float32)
    b = b.astype(jnp.float32)
    mean = jnp.mean(x32, axis=-1, keepdims=True)
    xc = x32 - mean
    var = jnp.mean(xc * xc, axis=-1, keepdims=True)
    return xc * lax.rsqrt(var + _EPS) * g + b


# ---------------------------------------------------------------------------
# Pallas kernels
# ---------------------------------------------------------------------------

def _ln_qkv_kernel(x_ref, g_ref, b_ref, wq_ref, bq_ref, wk_ref, bk_ref,
                   wv_ref, bv_ref, q_ref, k_ref, v_ref, *, num_heads, scale):
    # z = LN(x); q = scale*(z@Wq+bq); k = z@Wk+bk; v = z@Wv+bv
    # q/k/v stored head-split: [H, tt, dk] per batch block.
    x32 = x_ref[0].astype(jnp.float32)                       # [tt, D]
    z = _ln_f32(x32, g_ref[...], b_ref[...]).astype(wq_ref.dtype)
    q = (jnp.dot(z, wq_ref[...], preferred_element_type=jnp.float32)
         + bq_ref[...].astype(jnp.float32)) * scale
    k = (jnp.dot(z, wk_ref[...], preferred_element_type=jnp.float32)
         + bk_ref[...].astype(jnp.float32))
    v = (jnp.dot(z, wv_ref[...], preferred_element_type=jnp.float32)
         + bv_ref[...].astype(jnp.float32))
    dk = q.shape[-1] // num_heads
    for h in range(num_heads):                               # static head split
        sl = slice(h * dk, (h + 1) * dk)
        q_ref[0, h] = q[:, sl].astype(q_ref.dtype)
        k_ref[0, h] = k[:, sl].astype(k_ref.dtype)
        v_ref[0, h] = v[:, sl].astype(v_ref.dtype)


def _ln_q_kernel(x_ref, g_ref, b_ref, wq_ref, bq_ref, q_ref, *, num_heads, scale):
    x32 = x_ref[0].astype(jnp.float32)
    z = _ln_f32(x32, g_ref[...], b_ref[...]).astype(wq_ref.dtype)
    q = (jnp.dot(z, wq_ref[...], preferred_element_type=jnp.float32)
         + bq_ref[...].astype(jnp.float32)) * scale
    dk = q.shape[-1] // num_heads
    for h in range(num_heads):
        q_ref[0, h] = q[:, h * dk:(h + 1) * dk].astype(q_ref.dtype)


def _kv_kernel(m_ref, wk_ref, bk_ref, wv_ref, bv_ref, k_ref, v_ref, *, num_heads):
    m = m_ref[0].astype(wk_ref.dtype)                        # [tt, D]
    k = (jnp.dot(m, wk_ref[...], preferred_element_type=jnp.float32)
         + bk_ref[...].astype(jnp.float32))
    v = (jnp.dot(m, wv_ref[...], preferred_element_type=jnp.float32)
         + bv_ref[...].astype(jnp.float32))
    dk = k.shape[-1] // num_heads
    for h in range(num_heads):
        sl = slice(h * dk, (h + 1) * dk)
        k_ref[0, h] = k[:, sl].astype(k_ref.dtype)
        v_ref[0, h] = v[:, sl].astype(v_ref.dtype)


def _attn_outproj_kernel(q_ref, k_ref, v_ref, m_ref, r_ref, wo_ref, bo_ref,
                         o_ref, *, num_heads):
    # One batch per grid step.  q/k/v are head-split [H, T, dk]; both matmuls
    # batch over heads (single MXU calls).  Output = residual + ctx @ Wo + bo.
    # TODO(synk): flash-style KV tiling (online softmax) for very long Tk.
    q = q_ref[0]                                             # [H, Tq, dk] (pre-scaled)
    k = k_ref[0]                                             # [H, Tk, dk]
    v = v_ref[0]                                             # [H, Tk, dk]
    bias = jnp.where(m_ref[0] > 0, 0.0, _NEG_INF).astype(jnp.float32)  # [Tqm, Tk]

    s = lax.dot_general(q, k, (((2,), (2,)), ((0,), (0,))),
                        preferred_element_type=jnp.float32)  # [H, Tq, Tk]
    s = s + bias[None, :, :]
    s = s - jnp.max(s, axis=-1, keepdims=True)
    p = jnp.exp(s)
    p = p * pl.reciprocal(jnp.sum(p, axis=-1, keepdims=True), approx=True)

    ctx = lax.dot_general(p.astype(v.dtype), v, (((2,), (1,)), ((0,), (0,))),
                          preferred_element_type=jnp.float32)            # [H, Tq, dk]
    ctx2 = jnp.concatenate([ctx[h] for h in range(num_heads)], axis=-1)  # [Tq, D]

    y = (jnp.dot(ctx2.astype(wo_ref.dtype), wo_ref[...],
                 preferred_element_type=jnp.float32)
         + bo_ref[...].astype(jnp.float32))
    o_ref[0] = (r_ref[0].astype(jnp.float32) + y).astype(o_ref.dtype)


def _ln_ffn_kernel(x_ref, g_ref, b_ref, w1_ref, b1_ref, w2_ref, b2_ref, o_ref,
                   z_ref, acc_ref):
    # o = x + relu(LN(x) @ W1 + b1) @ W2 + b2, tiled over the F (hidden) axis.
    f = pl.program_id(1)

    @pl.when(f == 0)
    def _():
        z_ref[...] = _ln_f32(x_ref[...].astype(jnp.float32),
                             g_ref[...], b_ref[...]).astype(z_ref.dtype)
        acc_ref[...] = jnp.zeros_like(acc_ref)

    h = jnp.maximum(
        jnp.dot(z_ref[...], w1_ref[...], preferred_element_type=jnp.float32)
        + b1_ref[...].astype(jnp.float32), 0.0)
    acc_ref[...] += jnp.dot(h.astype(w2_ref.dtype), w2_ref[...],
                            preferred_element_type=jnp.float32)

    @pl.when(f == pl.num_programs(1) - 1)
    def _():
        o_ref[...] = (x_ref[...].astype(jnp.float32) + acc_ref[...]
                      + b2_ref[...].astype(jnp.float32)).astype(o_ref.dtype)


def _adapter_kernel(x_ref, g_ref, b_ref, wd_ref, bd_ref, wu_ref, bu_ref, o_ref):
    # bottleneck adapter: o = x + relu(LN(x) @ Wd + bd) @ Wu + bu
    x32 = x_ref[...].astype(jnp.float32)
    z = _ln_f32(x32, g_ref[...], b_ref[...]).astype(wd_ref.dtype)
    h = jnp.maximum(
        jnp.dot(z, wd_ref[...], preferred_element_type=jnp.float32)
        + bd_ref[...].astype(jnp.float32), 0.0)
    u = (jnp.dot(h.astype(wu_ref.dtype), wu_ref[...],
                 preferred_element_type=jnp.float32)
         + bu_ref[...].astype(jnp.float32))
    o_ref[...] = (x32 + u).astype(o_ref.dtype)


# ---------------------------------------------------------------------------
# pallas_call wrappers
# ---------------------------------------------------------------------------

def ln_qkv_headsplit(x, g, b, wq, bq, wk, bk, wv, bv, num_heads):
    """x:[B,T,D] -> q/k/v head-split [B,H,T,dk]; q pre-scaled by 1/sqrt(dk)."""
    B, T, D = x.shape
    dk = D // num_heads
    tt = _row_tile(T)
    scale = 1.0 / float(dk) ** 0.5
    ai = jnp.dtype(x.dtype).itemsize
    pi = jnp.dtype(wq.dtype).itemsize

    row = pl.BlockSpec((1, tt, D), lambda bi, ti: (bi, ti, 0))
    hsplit = pl.BlockSpec((1, num_heads, tt, dk), lambda bi, ti: (bi, 0, ti, 0))
    vec = pl.BlockSpec((1, D), lambda bi, ti: (0, 0))
    w = pl.BlockSpec((D, D), lambda bi, ti: (0, 0))
    out = jax.ShapeDtypeStruct((B, num_heads, T, dk), x.dtype)

    blk_bytes = 4 * tt * D * ai + (3 * D * D + 8 * D) * pi + 4 * tt * D * 4
    kern = functools.partial(_ln_qkv_kernel, num_heads=num_heads, scale=scale)
    return pl.pallas_call(
        kern,
        grid=(B, T // tt),
        in_specs=[row, vec, vec, w, vec, w, vec, w, vec],
        out_specs=(hsplit, hsplit, hsplit),
        out_shape=(out, out, out),
        compiler_params=_cparams(("parallel", "parallel"), blk_bytes),
    )(x, g.reshape(1, D), b.reshape(1, D), wq, bq.reshape(1, D),
      wk, bk.reshape(1, D), wv, bv.reshape(1, D))


def ln_q_headsplit(x, g, b, wq, bq, num_heads):
    B, T, D = x.shape
    dk = D // num_heads
    tt = _row_tile(T)
    scale = 1.0 / float(dk) ** 0.5
    ai = jnp.dtype(x.dtype).itemsize
    pi = jnp.dtype(wq.dtype).itemsize

    row = pl.BlockSpec((1, tt, D), lambda bi, ti: (bi, ti, 0))
    hsplit = pl.BlockSpec((1, num_heads, tt, dk), lambda bi, ti: (bi, 0, ti, 0))
    vec = pl.BlockSpec((1, D), lambda bi, ti: (0, 0))
    w = pl.BlockSpec((D, D), lambda bi, ti: (0, 0))

    blk_bytes = 2 * tt * D * ai + (D * D + 4 * D) * pi + 2 * tt * D * 4
    kern = functools.partial(_ln_q_kernel, num_heads=num_heads, scale=scale)
    return pl.pallas_call(
        kern,
        grid=(B, T // tt),
        in_specs=[row, vec, vec, w, vec],
        out_specs=hsplit,
        out_shape=jax.ShapeDtypeStruct((B, num_heads, T, dk), x.dtype),
        compiler_params=_cparams(("parallel", "parallel"), blk_bytes),
    )(x, g.reshape(1, D), b.reshape(1, D), wq, bq.reshape(1, D))


def kv_proj_headsplit(memory, wk, bk, wv, bv, num_heads):
    B, T, D = memory.shape
    dk = D // num_heads
    tt = _row_tile(T)
    ai = jnp.dtype(memory.dtype).itemsize
    pi = jnp.dtype(wk.dtype).itemsize

    row = pl.BlockSpec((1, tt, D), lambda bi, ti: (bi, ti, 0))
    hsplit = pl.BlockSpec((1, num_heads, tt, dk), lambda bi, ti: (bi, 0, ti, 0))
    vec = pl.BlockSpec((1, D), lambda bi, ti: (0, 0))
    w = pl.BlockSpec((D, D), lambda bi, ti: (0, 0))
    out = jax.ShapeDtypeStruct((B, num_heads, T, dk), memory.dtype)

    blk_bytes = 3 * tt * D * ai + (2 * D * D + 2 * D) * pi + 2 * tt * D * 4
    kern = functools.partial(_kv_kernel, num_heads=num_heads)
    return pl.pallas_call(
        kern,
        grid=(B, T // tt),
        in_specs=[row, w, vec, w, vec],
        out_specs=(hsplit, hsplit),
        out_shape=(out, out),
        compiler_params=_cparams(("parallel", "parallel"), blk_bytes),
    )(memory, wk, bk.reshape(1, D), wv, bv.reshape(1, D))


def attention_outproj_residual(q, k, v, mask, residual, wo, bo):
    """q:[B,H,Tq,dk] (pre-scaled), k/v:[B,H,Tk,dk], mask:[B,Tq or 1,Tk],
    residual:[B,Tq,D] -> residual + softmax(qk^T + mask_bias) v @ Wo + bo."""
    B, H, Tq, dk = q.shape
    Tk = k.shape[2]
    D = H * dk
    Tqm = mask.shape[1]
    ai = jnp.dtype(q.dtype).itemsize
    pi = jnp.dtype(wo.dtype).itemsize

    blk_bytes = ((H * Tq * dk + 2 * H * Tk * dk + 2 * Tq * D) * ai
                 + Tqm * Tk + (D * D + D) * pi + 2 * H * Tq * Tk * 4)
    kern = functools.partial(_attn_outproj_kernel, num_heads=H)
    return pl.pallas_call(
        kern,
        grid=(B,),
        in_specs=[
            pl.BlockSpec((1, H, Tq, dk), lambda bi: (bi, 0, 0, 0)),
            pl.BlockSpec((1, H, Tk, dk), lambda bi: (bi, 0, 0, 0)),
            pl.BlockSpec((1, H, Tk, dk), lambda bi: (bi, 0, 0, 0)),
            pl.BlockSpec((1, Tqm, Tk), lambda bi: (bi, 0, 0)),
            pl.BlockSpec((1, Tq, D), lambda bi: (bi, 0, 0)),
            pl.BlockSpec((D, D), lambda bi: (0, 0)),
            pl.BlockSpec((1, D), lambda bi: (0, 0)),
        ],
        out_specs=pl.BlockSpec((1, Tq, D), lambda bi: (bi, 0, 0)),
        out_shape=jax.ShapeDtypeStruct((B, Tq, D), residual.dtype),
        compiler_params=_cparams(("parallel",), blk_bytes),
    )(q, k, v, mask.astype(jnp.int8), residual, wo, bo.reshape(1, D))


def ln_ffn_residual(x2d, g, b, w1, b1, w2, b2):
    M, D = x2d.shape
    F = w1.shape[1]
    tm = _row_tile(M)
    tf = _lane_tile(F)
    ai = jnp.dtype(x2d.dtype).itemsize
    pi = jnp.dtype(w1.dtype).itemsize

    row = pl.BlockSpec((tm, D), lambda i, f: (i, 0))
    vecD = pl.BlockSpec((1, D), lambda i, f: (0, 0))
    w1s = pl.BlockSpec((D, tf), lambda i, f: (0, f))
    b1s = pl.BlockSpec((1, tf), lambda i, f: (0, f))
    w2s = pl.BlockSpec((tf, D), lambda i, f: (f, 0))

    blk_bytes = (2 * tm * D * ai + (2 * D * tf + tf + 3 * D) * pi
                 + tm * D * (4 + pi) + tm * tf * 4)
    return pl.pallas_call(
        _ln_ffn_kernel,
        grid=(M // tm, F // tf),
        in_specs=[row, vecD, vecD, w1s, b1s, w2s, vecD],
        out_specs=row,
        out_shape=jax.ShapeDtypeStruct((M, D), x2d.dtype),
        scratch_shapes=[pltpu.VMEM((tm, D), w1.dtype),      # LN(x) reused per F tile
                        pltpu.VMEM((tm, D), jnp.float32)],  # f32 accumulator
        compiler_params=_cparams(("parallel", "arbitrary"), blk_bytes),
    )(x2d, g.reshape(1, D), b.reshape(1, D), w1, b1.reshape(1, F),
      w2, b2.reshape(1, D))


def adapter_apply(x2d, g, b, wd, bd, wu, bu):
    M, D = x2d.shape
    BN = wd.shape[1]
    tm = _row_tile(M)
    ai = jnp.dtype(x2d.dtype).itemsize
    pi = jnp.dtype(wd.dtype).itemsize

    row = pl.BlockSpec((tm, D), lambda i: (i, 0))
    vecD = pl.BlockSpec((1, D), lambda i: (0, 0))
    vecB = pl.BlockSpec((1, BN), lambda i: (0, 0))
    wds = pl.BlockSpec((D, BN), lambda i: (0, 0))
    wus = pl.BlockSpec((BN, D), lambda i: (0, 0))

    blk_bytes = 2 * tm * D * ai + (2 * D * BN + BN + 3 * D) * pi + tm * BN * 4
    return pl.pallas_call(
        _adapter_kernel,
        grid=(M // tm,),
        in_specs=[row, vecD, vecD, wds, vecB, wus, vecD],
        out_specs=row,
        out_shape=jax.ShapeDtypeStruct((M, D), x2d.dtype),
        compiler_params=_cparams(("parallel",), blk_bytes),
    )(x2d, g.reshape(1, D), b.reshape(1, D), wd, bd.reshape(1, BN),
      wu, bu.reshape(1, D))


# ---------------------------------------------------------------------------
# Transformer decoder layer (glue in plain JAX, hot paths in Pallas)
# ---------------------------------------------------------------------------

def self_attention_block(x, trg_mask, p, ln_g, ln_b, num_heads):
    q, k, v = ln_qkv_headsplit(x, ln_g, ln_b, p["wq"], p["bq"], p["wk"], p["bk"],
                               p["wv"], p["bv"], num_heads)
    new_cache = (k, v)                                   # [B, H, Tq, dk] each
    out = attention_outproj_residual(q, k, v, trg_mask, x, p["wo"], p["bo"])
    return out, new_cache


def cross_attention_block(x, memory, src_mask, p, ln_g, ln_b, num_heads):
    q = ln_q_headsplit(x, ln_g, ln_b, p["wq"], p["bq"], num_heads)
    k, v = kv_proj_headsplit(memory, p["wk"], p["bk"], p["wv"], p["bv"], num_heads)
    new_cache = (k, v)                                   # [B, H, Tm, dk] each
    out = attention_outproj_residual(q, k, v, src_mask, x, p["wo"], p["bo"])
    return out, new_cache


def decoder_layer_forward(x, memory, src_mask, trg_mask, params, num_heads,
                          enc_attn_cache=None, self_attn_cache=None,
                          target_domain=None):
    """Mirrors TransformerDecoderLayerWithClassifierAdapter.forward (inference)."""
    # TODO(synk): incremental-decoding reuse of enc_attn_cache / self_attn_cache
    # inputs is not implemented; new caches are recomputed and returned.
    B, Tq, D = x.shape

    # sublayer_with_cache[0]: x + self_attn(LN(x))
    x, new_self_attn_cache = self_attention_block(
        x, trg_mask, params["self_attn"], params["ln0_g"], params["ln0_b"],
        num_heads)

    # sublayer_with_cache[1]: x + cross_attn(LN(x), memory)
    x, new_enc_attn_cache = cross_attention_block(
        x, memory, src_mask, params["cross_attn"], params["ln1_g"],
        params["ln1_b"], num_heads)

    # sublayer: x + FFN(LN(x))   (single fused kernel, F-tiled reduction)
    x = ln_ffn_residual(x.reshape(B * Tq, D), params["ln2_g"], params["ln2_b"],
                        params["ff_w1"], params["ff_b1"],
                        params["ff_w2"], params["ff_b2"]).reshape(B, Tq, D)

    # StackedAdapter (only when target_domain is given)
    # TODO(synk): exact StackedAdapter internals were not provided; implemented
    # as a per-domain bottleneck adapter (LN -> down -> relu -> up -> residual).
    if target_domain is not None:
        ad = params["adapters"][target_domain]
        x = adapter_apply(x.reshape(B * Tq, D), ad["ln_g"], ad["ln_b"],
                          ad["wd"], ad["bd"], ad["wu"], ad["bu"]
                          ).reshape(B, Tq, D)

    return x, new_enc_attn_cache, new_self_attn_cache


# ---------------------------------------------------------------------------
# Deterministic parameter init
# ---------------------------------------------------------------------------

def init_params(key, D, F, bottleneck, domains, dtype):
    def dense(k, din, dout):
        w = (0.02 * jax.random.normal(k, (din, dout), dtype=jnp.float32)).astype(dtype)
        return w, jnp.zeros((dout,), dtype=dtype)

    keys = jax.random.split(key, 32)
    it = iter(keys)

    def attn_params():
        wq, bq = dense(next(it), D, D)
        wk, bk = dense(next(it), D, D)
        wv, bv = dense(next(it), D, D)
        wo, bo = dense(next(it), D, D)
        return dict(wq=wq, bq=bq, wk=wk, bk=bk, wv=wv, bv=bv, wo=wo, bo=bo)

    ff_w1, ff_b1 = dense(next(it), D, F)
    ff_w2, ff_b2 = dense(next(it), F, D)

    ones = jnp.ones((D,), dtype)
    zeros = jnp.zeros((D,), dtype)

    adapters = {}
    for d in domains:
        wd, bd = dense(next(it), D, bottleneck)
        wu, bu = dense(next(it), bottleneck, D)
        adapters[d] = dict(ln_g=ones, ln_b=zeros, wd=wd, bd=bd, wu=wu, bu=bu)

    return dict(
        self_attn=attn_params(),
        cross_attn=attn_params(),
        ff_w1=ff_w1, ff_b1=ff_b1, ff_w2=ff_w2, ff_b2=ff_b2,
        ln0_g=ones, ln0_b=zeros,
        ln1_g=ones, ln1_b=zeros,
        ln2_g=ones, ln2_b=zeros,
        adapters=adapters,
    )


# ---------------------------------------------------------------------------
# main
# ---------------------------------------------------------------------------

if __name__ == "__main__":
    B, Tq, Tm, D, H, F, BN = 2, 8, 8, 32, 4, 64, 16
    dtype = jnp.bfloat16                      # bf16 activations/weights -> bf16 MXU
    key = jax.random.PRNGKey(0)
    k_x, k_m, k_p = jax.random.split(key, 3)

    x = jax.random.normal(k_x, (B, Tq, D), dtype=jnp.float32).astype(dtype)
    memory = jax.random.normal(k_m, (B, Tm, D), dtype=jnp.float32).astype(dtype)

    # causal target mask [B, Tq, Tq]; full source mask [B, 1, Tm]
    trg_mask = jnp.broadcast_to(jnp.tril(jnp.ones((Tq, Tq), jnp.float32))[None],
                                (B, Tq, Tq))
    src_mask = jnp.ones((B, 1, Tm), jnp.float32)

    params = init_params(k_p, D, F, BN, ("domain_a", "domain_b"), dtype)

    out, enc_cache, self_cache = decoder_layer_forward(
        x, memory, src_mask, trg_mask, params, num_heads=H,
        target_domain="domain_a")

    jax.block_until_ready(out)
    jax.block_until_ready(enc_cache)
    jax.block_until_ready(self_cache)

    assert out.shape == (B, Tq, D)
    assert out.dtype == jnp.dtype(dtype)
    assert enc_cache[0].shape == (B, H, Tm, D // H)
    assert self_cache[0].shape == (B, H, Tq, D // H)
    assert bool(jnp.all(jnp.isfinite(out.astype(jnp.float32))))
    print("KERNEL_OK")
</pallas_src>

<mosaic_0001>
module attributes {stable_mosaic.version = 11 : i64} {
  func.func @_ln_qkv_kernel(%arg0: i32, %arg1: i32, %arg2: memref<1x8x32xbf16, #tpu.memory_space<vmem>>, %arg3: memref<1x32xbf16, #tpu.memory_space<vmem>>, %arg4: memref<1x32xbf16, #tpu.memory_space<vmem>>, %arg5: memref<32x32xbf16, #tpu.memory_space<vmem>>, %arg6: memref<1x32xbf16, #tpu.memory_space<vmem>>, %arg7: memref<32x32xbf16, #tpu.memory_space<vmem>>, %arg8: memref<1x32xbf16, #tpu.memory_space<vmem>>, %arg9: memref<32x32xbf16, #tpu.memory_space<vmem>>, %arg10: memref<1x32xbf16, #tpu.memory_space<vmem>>, %arg11: memref<1x4x8x8xbf16, #tpu.memory_space<vmem>>, %arg12: memref<1x4x8x8xbf16, #tpu.memory_space<vmem>>, %arg13: memref<1x4x8x8xbf16, #tpu.memory_space<vmem>>) attributes {dimension_semantics = [#tpu.dimension_semantics<parallel>, #tpu.dimension_semantics<parallel>], iteration_bounds = array<i64: 2, 1>, scalar_prefetch = 0 : i64, scratch_operands = 0 : i64, tpu.core_type = #tpu.core_type<tc>, window_params = [{transform_indices = @transform_0, window_bounds = array<i64: 1, 8, 32>}, {pipeline_mode = #tpu.pipeline_mode<synchronous>, transform_indices = @transform_1, window_bounds = array<i64: 1, 32>}, {pipeline_mode = #tpu.pipeline_mode<synchronous>, transform_indices = @transform_2, window_bounds = array<i64: 1, 32>}, {pipeline_mode = #tpu.pipeline_mode<synchronous>, transform_indices = @transform_3, window_bounds = array<i64: 32, 32>}, {pipeline_mode = #tpu.pipeline_mode<synchronous>, transform_indices = @transform_4, window_bounds = array<i64: 1, 32>}, {pipeline_mode = #tpu.pipeline_mode<synchronous>, transform_indices = @transform_5, window_bounds = array<i64: 32, 32>}, {pipeline_mode = #tpu.pipeline_mode<synchronous>, transform_indices = @transform_6, window_bounds = array<i64: 1, 32>}, {pipeline_mode = #tpu.pipeline_mode<synchronous>, transform_indices = @transform_7, window_bounds = array<i64: 32, 32>}, {pipeline_mode = #tpu.pipeline_mode<synchronous>, transform_indices = @transform_8, window_bounds = array<i64: 1, 32>}, {transform_indices = @transform_9, window_bounds = array<i64: 1, 4, 8, 8>}, {transform_indices = @transform_10, window_bounds = array<i64: 1, 4, 8, 8>}, {transform_indices = @transform_11, window_bounds = array<i64: 1, 4, 8, 8>}]} {
    %c0 = arith.constant 0 : index
    %c0_0 = arith.constant 0 : index
    %c0_1 = arith.constant 0 : index
    %0 = vector.load %arg2[%c0, %c0_0, %c0_1] : memref<1x8x32xbf16, #tpu.memory_space<vmem>>, vector<1x8x32xbf16>
    %1 = vector.shape_cast %0 : vector<1x8x32xbf16> to vector<8x32xbf16>
    %2 = arith.extf %1 : vector<8x32xbf16> to vector<8x32xf32>
    %c0_2 = arith.constant 0 : index
    %c0_3 = arith.constant 0 : index
    %3 = vector.load %arg3[%c0_2, %c0_3] : memref<1x32xbf16, #tpu.memory_space<vmem>>, vector<1x32xbf16>
    %c0_4 = arith.constant 0 : index
    %c0_5 = arith.constant 0 : index
    %4 = vector.load %arg4[%c0_4, %c0_5] : memref<1x32xbf16, #tpu.memory_space<vmem>>, vector<1x32xbf16>
    %5 = arith.extf %3 : vector<1x32xbf16> to vector<1x32xf32>
    %6 = arith.extf %4 : vector<1x32xbf16> to vector<1x32xf32>
    %cst = arith.constant dense<0.000000e+00> : vector<8xf32>
    %7 = vector.multi_reduction <add>, %2, %cst [1] : vector<8x32xf32> to vector<8xf32>
    %8 = vector.shape_cast %7 : vector<8xf32> to vector<8x1xf32>
    %cst_6 = arith.constant 3.200000e+01 : f32
    %9 = vector.broadcast %cst_6 : f32 to vector<8x1xf32>
    %10 = arith.divf %8, %9 : vector<8x1xf32>
    %11 = vector.broadcast %10 : vector<8x1xf32> to vector<8x32xf32>
    %12 = arith.subf %2, %11 : vector<8x32xf32>
    %13 = arith.mulf %12, %12 : vector<8x32xf32>
    %cst_7 = arith.constant dense<0.000000e+00> : vector<8xf32>
    %14 = vector.multi_reduction <add>, %13, %cst_7 [1] : vector<8x32xf32> to vector<8xf32>
    %15 = vector.shape_cast %14 : vector<8xf32> to vector<8x1xf32>
    %cst_8 = arith.constant 3.200000e+01 : f32
    %16 = vector.broadcast %cst_8 : f32 to vector<8x1xf32>
    %17 = arith.divf %15, %16 : vector<8x1xf32>
    %cst_9 = arith.constant 9.99999974E-6 : f32
    %18 = vector.broadcast %cst_9 : f32 to vector<8x1xf32>
    %19 = arith.addf %17, %18 : vector<8x1xf32>
    %20 = math.rsqrt %19 : vector<8x1xf32>
    %21 = vector.broadcast %20 : vector<8x1xf32> to vector<8x32xf32>
    %22 = arith.mulf %12, %21 : vector<8x32xf32>
    %23 = vector.broadcast %5 : vector<1x32xf32> to vector<8x32xf32>
    %24 = arith.mulf %22, %23 : vector<8x32xf32>
    %25 = vector.broadcast %6 : vector<1x32xf32> to vector<8x32xf32>
    %26 = arith.addf %24, %25 : vector<8x32xf32>
    %27 = arith.truncf %26 : vector<8x32xf32> to vector<8x32xbf16>
    %c0_10 = arith.constant 0 : index
    %c0_11 = arith.constant 0 : index
    %28 = vector.load %arg5[%c0_10, %c0_11] : memref<32x32xbf16, #tpu.memory_space<vmem>>, vector<32x32xbf16>
    %cst_12 = arith.constant dense<0.000000e+00> : vector<8x32xf32>
    %29 = tpu.matmul %27, %28, %cst_12 {dimension_numbers = #tpu.dot_dimension_numbers<[1], [0], [0], [1], [0, 0, 1, 1], [], []>} : vector<8x32xbf16>, vector<32x32xbf16>, vector<8x32xf32> -> vector<8x32xf32>
    %c0_13 = arith.constant 0 : index
    %c0_14 = arith.constant 0 : index
    %30 = vector.load %arg6[%c0_13, %c0_14] : memref<1x32xbf16, #tpu.memory_space<vmem>>, vector<1x32xbf16>
    %31 = arith.extf %30 : vector<1x32xbf16> to vector<1x32xf32>
    %32 = vector.broadcast %31 : vector<1x32xf32> to vector<8x32xf32>
    %33 = arith.addf %29, %32 : vector<8x32xf32>
    %cst_15 = arith.constant 0.353553385 : f32
    %34 = vector.broadcast %cst_15 : f32 to vector<8x32xf32>
    %35 = arith.mulf %33, %34 : vector<8x32xf32>
    %c0_16 = arith.constant 0 : index
    %c0_17 = arith.constant 0 : index
    %36 = vector.load %arg7[%c0_16, %c0_17] : memref<32x32xbf16, #tpu.memory_space<vmem>>, vector<32x32xbf16>
    %cst_18 = arith.constant dense<0.000000e+00> : vector<8x32xf32>
    %37 = tpu.matmul %27, %36, %cst_18 {dimension_numbers = #tpu.dot_dimension_numbers<[1], [0], [0], [1], [0, 0, 1, 1], [], []>} : vector<8x32xbf16>, vector<32x32xbf16>, vector<8x32xf32> -> vector<8x32xf32>
    %c0_19 = arith.constant 0 : index
    %c0_20 = arith.constant 0 : index
    %38 = vector.load %arg8[%c0_19, %c0_20] : memref<1x32xbf16, #tpu.memory_space<vmem>>, vector<1x32xbf16>
    %39 = arith.extf %38 : vector<1x32xbf16> to vector<1x32xf32>
    %40 = vector.broadcast %39 : vector<1x32xf32> to vector<8x32xf32>
    %41 = arith.addf %37, %40 : vector<8x32xf32>
    %c0_21 = arith.constant 0 : index
    %c0_22 = arith.constant 0 : index
    %42 = vector.load %arg9[%c0_21, %c0_22] : memref<32x32xbf16, #tpu.memory_space<vmem>>, vector<32x32xbf16>
    %cst_23 = arith.constant dense<0.000000e+00> : vector<8x32xf32>
    %43 = tpu.matmul %27, %42, %cst_23 {dimension_numbers = #tpu.dot_dimension_numbers<[1], [0], [0], [1], [0, 0, 1, 1], [], []>} : vector<8x32xbf16>, vector<32x32xbf16>, vector<8x32xf32> -> vector<8x32xf32>
    %c0_24 = arith.constant 0 : index
    %c0_25 = arith.constant 0 : index
    %44 = vector.load %arg10[%c0_24, %c0_25] : memref<1x32xbf16, #tpu.memory_space<vmem>>, vector<1x32xbf16>
    %45 = arith.extf %44 : vector<1x32xbf16> to vector<1x32xf32>
    %46 = vector.broadcast %45 : vector<1x32xf32> to vector<8x32xf32>
    %47 = arith.addf %43, %46 : vector<8x32xf32>
    %48 = vector.extract_strided_slice %35 {offsets = [0, 0], sizes = [8, 8], strides = [1, 1]} : vector<8x32xf32> to vector<8x8xf32>
    %49 = arith.truncf %48 : vector<8x8xf32> to vector<8x8xbf16>
    %c0_26 = arith.constant 0 : index
    %c0_27 = arith.constant 0 : index
    %c0_28 = arith.constant 0 : index
    %c0_29 = arith.constant 0 : index
    %50 = vector.load %arg11[%c0_26, %c0_27, %c0_28, %c0_29] : memref<1x4x8x8xbf16, #tpu.memory_space<vmem>>, vector<1x1x8x8xbf16>
    %51 = vector.shape_cast %50 : vector<1x1x8x8xbf16> to vector<8x8xbf16>
    %52 = vector.shape_cast %49 : vector<8x8xbf16> to vector<1x1x8x8xbf16>
    tpu.vector_store %arg11[%c0_26, %c0_27, %c0_28, %c0_29], %52 {strides = array<i32>} : memref<1x4x8x8xbf16, #tpu.memory_space<vmem>>, vector<1x1x8x8xbf16>,
    %53 = vector.extract_strided_slice %41 {offsets = [0, 0], sizes = [8, 8], strides = [1, 1]} : vector<8x32xf32> to vector<8x8xf32>
    %54 = arith.truncf %53 : vector<8x8xf32> to vector<8x8xbf16>
    %c0_30 = arith.constant 0 : index
    %c0_31 = arith.constant 0 : index
    %c0_32 = arith.constant 0 : index
    %c0_33 = arith.constant 0 : index
    %55 = vector.load %arg12[%c0_30, %c0_31, %c0_32, %c0_33] : memref<1x4x8x8xbf16, #tpu.memory_space<vmem>>, vector<1x1x8x8xbf16>
    %56 = vector.shape_cast %55 : vector<1x1x8x8xbf16> to vector<8x8xbf16>
    %57 = vector.shape_cast %54 : vector<8x8xbf16> to vector<1x1x8x8xbf16>
    tpu.vector_store %arg12[%c0_30, %c0_31, %c0_32, %c0_33], %57 {strides = array<i32>} : memref<1x4x8x8xbf16, #tpu.memory_space<vmem>>, vector<1x1x8x8xbf16>,
    %58 = vector.extract_strided_slice %47 {offsets = [0, 0], sizes = [8, 8], strides = [1, 1]} : vector<8x32xf32> to vector<8x8xf32>
    %59 = arith.truncf %58 : vector<8x8xf32> to vector<8x8xbf16>
    %c0_34 = arith.constant 0 : index
    %c0_35 = arith.constant 0 : index
    %c0_36 = arith.constant 0 : index
    %c0_37 = arith.constant 0 : index
    %60 = vector.load %arg13[%c0_34, %c0_35, %c0_36, %c0_37] : memref<1x4x8x8xbf16, #tpu.memory_space<vmem>>, vector<1x1x8x8xbf16>
    %61 = vector.shape_cast %60 : vector<1x1x8x8xbf16> to vector<8x8xbf16>
    %62 = vector.shape_cast %59 : vector<8x8xbf16> to vector<1x1x8x8xbf16>
    tpu.vector_store %arg13[%c0_34, %c0_35, %c0_36, %c0_37], %62 {strides = array<i32>} : memref<1x4x8x8xbf16, #tpu.memory_space<vmem>>, vector<1x1x8x8xbf16>,
    %63 = vector.extract_strided_slice %35 {offsets = [0, 8], sizes = [8, 8], strides = [1, 1]} : vector<8x32xf32> to vector<8x8xf32>
    %64 = arith.truncf %63 : vector<8x8xf32> to vector<8x8xbf16>
    %c0_38 = arith.constant 0 : index
    %c1 = arith.constant 1 : index
    %c0_39 = arith.constant 0 : index
    %c0_40 = arith.constant 0 : index
    %65 = vector.load %arg11[%c0_38, %c1, %c0_39, %c0_40] : memref<1x4x8x8xbf16, #tpu.memory_space<vmem>>, vector<1x1x8x8xbf16>
    %66 = vector.shape_cast %65 : vector<1x1x8x8xbf16> to vector<8x8xbf16>
    %67 = vector.shape_cast %64 : vector<8x8xbf16> to vector<1x1x8x8xbf16>
    tpu.vector_store %arg11[%c0_38, %c1, %c0_39, %c0_40], %67 {strides = array<i32>} : memref<1x4x8x8xbf16, #tpu.memory_space<vmem>>, vector<1x1x8x8xbf16>,
    %68 = vector.extract_strided_slice %41 {offsets = [0, 8], sizes = [8, 8], strides = [1, 1]} : vector<8x32xf32> to vector<8x8xf32>
    %69 = arith.truncf %68 : vector<8x8xf32> to vector<8x8xbf16>
    %c0_41 = arith.constant 0 : index
    %c1_42 = arith.constant 1 : index
    %c0_43 = arith.constant 0 : index
    %c0_44 = arith.constant 0 : index
    %70 = vector.load %arg12[%c0_41, %c1_42, %c0_43, %c0_44] : memref<1x4x8x8xbf16, #tpu.memory_space<vmem>>, vector<1x1x8x8xbf16>
    %71 = vector.shape_cast %70 : vector<1x1x8x8xbf16> to vector<8x8xbf16>
    %72 = vector.shape_cast %69 : vector<8x8xbf16> to vector<1x1x8x8xbf16>
    tpu.vector_store %arg12[%c0_41, %c1_42, %c0_43, %c0_44], %72 {strides = array<i32>} : memref<1x4x8x8xbf16, #tpu.memory_space<vmem>>, vector<1x1x8x8xbf16>,
    %73 = vector.extract_strided_slice %47 {offsets = [0, 8], sizes = [8, 8], strides = [1, 1]} : vector<8x32xf32> to vector<8x8xf32>
    %74 = arith.truncf %73 : vector<8x8xf32> to vector<8x8xbf16>
    %c0_45 = arith.constant 0 : index
    %c1_46 = arith.constant 1 : index
    %c0_47 = arith.constant 0 : index
    %c0_48 = arith.constant 0 : index
    %75 = vector.load %arg13[%c0_45, %c1_46, %c0_47, %c0_48] : memref<1x4x8x8xbf16, #tpu.memory_space<vmem>>, vector<1x1x8x8xbf16>
    %76 = vector.shape_cast %75 : vector<1x1x8x8xbf16> to vector<8x8xbf16>
    %77 = vector.shape_cast %74 : vector<8x8xbf16> to vector<1x1x8x8xbf16>
    tpu.vector_store %arg13[%c0_45, %c1_46, %c0_47, %c0_48], %77 {strides = array<i32>} : memref<1x4x8x8xbf16, #tpu.memory_space<vmem>>, vector<1x1x8x8xbf16>,
    %78 = vector.extract_strided_slice %35 {offsets = [0, 16], sizes = [8, 8], strides = [1, 1]} : vector<8x32xf32> to vector<8x8xf32>
    %79 = arith.truncf %78 : vector<8x8xf32> to vector<8x8xbf16>
    %c0_49 = arith.constant 0 : index
    %c2 = arith.constant 2 : index
    %c0_50 = arith.constant 0 : index
    %c0_51 = arith.constant 0 : index
    %80 = vector.load %arg11[%c0_49, %c2, %c0_50, %c0_51] : memref<1x4x8x8xbf16, #tpu.memory_space<vmem>>, vector<1x1x8x8xbf16>
    %81 = vector.shape_cast %80 : vector<1x1x8x8xbf16> to vector<8x8xbf16>
    %82 = vector.shape_cast %79 : vector<8x8xbf16> to vector<1x1x8x8xbf16>
    tpu.vector_store %arg11[%c0_49, %c2, %c0_50, %c0_51], %82 {strides = array<i32>} : memref<1x4x8x8xbf16, #tpu.memory_space<vmem>>, vector<1x1x8x8xbf16>,
    %83 = vector.extract_strided_slice %41 {offsets = [0, 16], sizes = [8, 8], strides = [1, 1]} : vector<8x32xf32> to vector<8x8xf32>
    %84 = arith.truncf %83 : vector<8x8xf32> to vector<8x8xbf16>
    %c0_52 = arith.constant 0 : index
    %c2_53 = arith.constant 2 : index
    %c0_54 = arith.constant 0 : index
    %c0_55 = arith.constant 0 : index
    %85 = vector.load %arg12[%c0_52, %c2_53, %c0_54, %c0_55] : memref<1x4x8x8xbf16, #tpu.memory_space<vmem>>, vector<1x1x8x8xbf16>
    %86 = vector.shape_cast %85 : vector<1x1x8x8xbf16> to vector<8x8xbf16>
    %87 = vector.shape_cast %84 : vector<8x8xbf16> to vector<1x1x8x8xbf16>
    tpu.vector_store %arg12[%c0_52, %c2_53, %c0_54, %c0_55], %87 {strides = array<i32>} : memref<1x4x8x8xbf16, #tpu.memory_space<vmem>>, vector<1x1x8x8xbf16>,
    %88 = vector.extract_strided_slice %47 {offsets = [0, 16], sizes = [8, 8], strides = [1, 1]} : vector<8x32xf32> to vector<8x8xf32>
    %89 = arith.truncf %88 : vector<8x8xf32> to vector<8x8xbf16>
    %c0_56 = arith.constant 0 : index
    %c2_57 = arith.constant 2 : index
    %c0_58 = arith.constant 0 : index
    %c0_59 = arith.constant 0 : index
    %90 = vector.load %arg13[%c0_56, %c2_57, %c0_58, %c0_59] : memref<1x4x8x8xbf16, #tpu.memory_space<vmem>>, vector<1x1x8x8xbf16>
    %91 = vector.shape_cast %90 : vector<1x1x8x8xbf16> to vector<8x8xbf16>
    %92 = vector.shape_cast %89 : vector<8x8xbf16> to vector<1x1x8x8xbf16>
    tpu.vector_store %arg13[%c0_56, %c2_57, %c0_58, %c0_59], %92 {strides = array<i32>} : memref<1x4x8x8xbf16, #tpu.memory_space<vmem>>, vector<1x1x8x8xbf16>,
    %93 = vector.extract_strided_slice %35 {offsets = [0, 24], sizes = [8, 8], strides = [1, 1]} : vector<8x32xf32> to vector<8x8xf32>
    %94 = arith.truncf %93 : vector<8x8xf32> to vector<8x8xbf16>
    %c0_60 = arith.constant 0 : index
    %c3 = arith.constant 3 : index
    %c0_61 = arith.constant 0 : index
    %c0_62 = arith.constant 0 : index
    %95 = vector.load %arg11[%c0_60, %c3, %c0_61, %c0_62] : memref<1x4x8x8xbf16, #tpu.memory_space<vmem>>, vector<1x1x8x8xbf16>
    %96 = vector.shape_cast %95 : vector<1x1x8x8xbf16> to vector<8x8xbf16>
    %97 = vector.shape_cast %94 : vector<8x8xbf16> to vector<1x1x8x8xbf16>
    tpu.vector_store %arg11[%c0_60, %c3, %c0_61, %c0_62], %97 {strides = array<i32>} : memref<1x4x8x8xbf16, #tpu.memory_space<vmem>>, vector<1x1x8x8xbf16>,
    %98 = vector.extract_strided_slice %41 {offsets = [0, 24], sizes = [8, 8], strides = [1, 1]} : vector<8x32xf32> to vector<8x8xf32>
    %99 = arith.truncf %98 : vector<8x8xf32> to vector<8x8xbf16>
    %c0_63 = arith.constant 0 : index
    %c3_64 = arith.constant 3 : index
    %c0_65 = arith.constant 0 : index
    %c0_66 = arith.constant 0 : index
    %100 = vector.load %arg12[%c0_63, %c3_64, %c0_65, %c0_66] : memref<1x4x8x8xbf16, #tpu.memory_space<vmem>>, vector<1x1x8x8xbf16>
    %101 = vector.shape_cast %100 : vector<1x1x8x8xbf16> to vector<8x8xbf16>
    %102 = vector.shape_cast %99 : vector<8x8xbf16> to vector<1x1x8x8xbf16>
    tpu.vector_store %arg12[%c0_63, %c3_64, %c0_65, %c0_66], %102 {strides = array<i32>} : memref<1x4x8x8xbf16, #tpu.memory_space<vmem>>, vector<1x1x8x8xbf16>,
    %103 = vector.extract_strided_slice %47 {offsets = [0, 24], sizes = [8, 8], strides = [1, 1]} : vector<8x32xf32> to vector<8x8xf32>
    %104 = arith.truncf %103 : vector<8x8xf32> to vector<8x8xbf16>
    %c0_67 = arith.constant 0 : index
    %c3_68 = arith.constant 3 : index
    %c0_69 = arith.constant 0 : index
    %c0_70 = arith.constant 0 : index
    %105 = vector.load %arg13[%c0_67, %c3_68, %c0_69, %c0_70] : memref<1x4x8x8xbf16, #tpu.memory_space<vmem>>, vector<1x1x8x8xbf16>
    %106 = vector.shape_cast %105 : vector<1x1x8x8xbf16> to vector<8x8xbf16>
    %107 = vector.shape_cast %104 : vector<8x8xbf16> to vector<1x1x8x8xbf16>
    tpu.vector_store %arg13[%c0_67, %c3_68, %c0_69, %c0_70], %107 {strides = array<i32>} : memref<1x4x8x8xbf16, #tpu.memory_space<vmem>>, vector<1x1x8x8xbf16>,
    return
  }
  func.func @transform_0(%arg0: i32, %arg1: i32) -> (i32, i32, i32) {
    %c0_i32 = arith.constant 0 : i32
    %c0_i32_0 = arith.constant 0 : i32
    return %arg0, %arg1, %c0_i32 : i32, i32, i32
  }
  func.func @transform_1(%arg0: i32, %arg1: i32) -> (i32, i32) {
    %c0_i32 = arith.constant 0 : i32
    %c0_i32_0 = arith.constant 0 : i32
    %c0_i32_1 = arith.constant 0 : i32
    return %c0_i32, %c0_i32_0 : i32, i32
  }
  func.func @transform_2(%arg0: i32, %arg1: i32) -> (i32, i32) {
    %c0_i32 = arith.constant 0 : i32
    %c0_i32_0 = arith.constant 0 : i32
    %c0_i32_1 = arith.constant 0 : i32
    return %c0_i32, %c0_i32_0 : i32, i32
  }
  func.func @transform_3(%arg0: i32, %arg1: i32) -> (i32, i32) {
    %c0_i32 = arith.constant 0 : i32
    %c0_i32_0 = arith.constant 0 : i32
    %c0_i32_1 = arith.constant 0 : i32
    return %c0_i32, %c0_i32_0 : i32, i32
  }
  func.func @transform_4(%arg0: i32, %arg1: i32) -> (i32, i32) {
    %c0_i32 = arith.constant 0 : i32
    %c0_i32_0 = arith.constant 0 : i32
    %c0_i32_1 = arith.constant 0 : i32
    return %c0_i32, %c0_i32_0 : i32, i32
  }
  func.func @transform_5(%arg0: i32, %arg1: i32) -> (i32, i32) {
    %c0_i32 = arith.constant 0 : i32
    %c0_i32_0 = arith.constant 0 : i32
    %c0_i32_1 = arith.constant 0 : i32
    return %c0_i32, %c0_i32_0 : i32, i32
  }
  func.func @transform_6(%arg0: i32, %arg1: i32) -> (i32, i32) {
    %c0_i32 = arith.constant 0 : i32
    %c0_i32_0 = arith.constant 0 : i32
    %c0_i32_1 = arith.constant 0 : i32
    return %c0_i32, %c0_i32_0 : i32, i32
  }
  func.func @transform_7(%arg0: i32, %arg1: i32) -> (i32, i32) {
    %c0_i32 = arith.constant 0 : i32
    %c0_i32_0 = arith.constant 0 : i32
    %c0_i32_1 = arith.constant 0 : i32
    return %c0_i32, %c0_i32_0 : i32, i32
  }
  func.func @transform_8(%arg0: i32, %arg1: i32) -> (i32, i32) {
    %c0_i32 = arith.constant 0 : i32
    %c0_i32_0 = arith.constant 0 : i32
    %c0_i32_1 = arith.constant 0 : i32
    return %c0_i32, %c0_i32_0 : i32, i32
  }
  func.func @transform_9(%arg0: i32, %arg1: i32) -> (i32, i32, i32, i32) {
    %c0_i32 = arith.constant 0 : i32
    %c0_i32_0 = arith.constant 0 : i32
    %c0_i32_1 = arith.constant 0 : i32
    return %arg0, %c0_i32, %arg1, %c0_i32_0 : i32, i32, i32, i32
  }
  func.func @transform_10(%arg0: i32, %arg1: i32) -> (i32, i32, i32, i32) {
    %c0_i32 = arith.constant 0 : i32
    %c0_i32_0 = arith.constant 0 : i32
    %c0_i32_1 = arith.constant 0 : i32
    return %arg0, %c0_i32, %arg1, %c0_i32_0 : i32, i32, i32, i32
  }
  func.func @transform_11(%arg0: i32, %arg1: i32) -> (i32, i32, i32, i32) {
    %c0_i32 = arith.constant 0 : i32
    %c0_i32_0 = arith.constant 0 : i32
    %c0_i32_1 = arith.constant 0 : i32
    return %arg0, %c0_i32, %arg1, %c0_i32_0 : i32, i32, i32, i32
  }
}

</mosaic_0001>

<llo_original>
// kernel: tpu_custom_call.1
$region0: #{tpu_custom_call.1}
  #allocation0 [shape = 'u32[]', space=smem, size = 0x4, offset = 0x4, fixed_abs, tag = 'smem constant byte address 0x4 - core index']
  #allocation1 [shape = 'u32[144,128]{1,0:T(1,128)}', space=vmem, size = 0x12000, scoped, tag = 'internal scratch']
  %s0 = inlined_call_operand.hbm [shape: bf16[2,8,32], index: 0, kind: input, shape index: {}]
  %s1 = inlined_call_operand.vmem [shape: bf16[1,32], index: 1, kind: input, shape index: {}]
  %s2 = inlined_call_operand.vmem [shape: bf16[1,32], index: 2, kind: input, shape index: {}]
  %s3 = inlined_call_operand.hbm [shape: bf16[32,32], index: 3, kind: input, shape index: {}]
  %s4 = inlined_call_operand.hbm [shape: bf16[1,32], index: 4, kind: input, shape index: {}]
  %s5 = inlined_call_operand.vmem [shape: bf16[32,32], index: 5, kind: input, shape index: {}]
  %s6 = inlined_call_operand.vmem [shape: bf16[1,32], index: 6, kind: input, shape index: {}]
  %s7 = inlined_call_operand.hbm [shape: bf16[32,32], index: 7, kind: input, shape index: {}]
  %s8 = inlined_call_operand.vmem [shape: bf16[1,32], index: 8, kind: input, shape index: {}]
  %s9 = inlined_call_operand.hbm [shape: bf16[2,4,8,8], index: 9, kind: output, shape index: {0}]
  %s10 = inlined_call_operand.hbm [shape: bf16[2,4,8,8], index: 10, kind: output, shape index: {1}]
  %s11 = inlined_call_operand.hbm [shape: bf16[2,4,8,8], index: 11, kind: output, shape index: {2}]
  %12 = xla_tuple %s9, %s10, %s11
  %s13 = sld [smem:[#allocation0]]
  $region101: #{tpu_custom_call.1} parent=0
    _
  %s15 = ssub.s32 1, %s13
  %s16 = scalar_select 0, %s15, %s13
  $region1: #{tpu_custom_call.1} parent=0
    #allocation2 [shape = 'u8[4096]{0}', space=vmem, size = 0x1000, scoped, tag = 'input window, operand 0']
    #allocation3 [shape = 's32[2]{0}', space=sflag, size = 0x8, scoped, tag = 'scoped memory for tpu_custom_call.1']
    #allocation4 [shape = 's32[2]{0}', space=sflag, size = 0x8, scoped, tag = 'scoped memory for tpu_custom_call.1']
    #allocation5 [shape = 'u8[8192]{0}', space=vmem, size = 0x2000, scoped, tag = 'input window, operand 3, single buffered']
    #allocation6 [shape = 's32[1]{0}', space=sflag, size = 0x4, scoped, tag = 'scoped memory for tpu_custom_call.1']
    #allocation7 [shape = 'u8[512]{0}', space=vmem, size = 0x400, scoped, tag = 'input window, operand 4, single buffered']
    #allocation8 [shape = 'u8[8192]{0}', space=vmem, size = 0x2000, scoped, tag = 'input window, operand 7, single buffered']
    #allocation9 [shape = 's32[1]{0}', space=sflag, size = 0x4, scoped, tag = 'scoped memory for tpu_custom_call.1']
    #allocation10 [shape = 'u8[16384]{0}', space=vmem, size = 0x4000, scoped, tag = 'output window, operand 0']
    #allocation11 [shape = 'u8[16384]{0}', space=vmem, size = 0x4000, scoped, tag = 'output window, operand 1']
    #allocation12 [shape = 's32[2]{0}', space=sflag, size = 0x8, scoped, tag = 'scoped memory for tpu_custom_call.1']
    #allocation13 [shape = 'u8[16384]{0}', space=vmem, size = 0x4000, scoped, tag = 'output window, operand 2']
    %17 = vsyncpa [#allocation3], 0
    %s18 = scalar_lea.sflag [#allocation3], 1
    %19 = vsyncpa %s18, 0
    %20 = vsyncpa [#allocation6], 0
    %21 = vsyncpa [#allocation9], 0
    %22 = vsyncpa [#allocation4], 0
    %s23 = scalar_lea.sflag [#allocation4], 1
    %24 = vsyncpa %s23, 0
    %25 = vsyncpa [#allocation12], 0
    %s26 = scalar_lea.sflag [#allocation12], 1
    %27 = vsyncpa %s26, 0
    loop: start=0, step=1, limit=4
    $region2: #{tpu_custom_call.1} parent=1 // loop_pre_header
      _
    $region3: #{tpu_custom_call.1} parent=1 // loop_header
      %s29 = sphi 0, %s33
      %p30 = scmp.ge.s32.totalorder %s29, 4
      %s36 = sphi 0, %s48
      %s37 = sphi 0, %s44
      %s38 = sphi 0, %s36
      %s39 = sphi 0, %s37
      %s40 = sphi 0, %s38
      %s41 = sphi 0, %s39
      %s53 = sphi 0, %s55
      %s56 = sphi 0, %s53
      %s57 = sphi 0, %s56
      %s73 = sphi 0, %s57
      %s77 = sphi 0, %s77
      %s79 = sphi 0, %s77
      %s80 = sphi 0, %s79
      %s94 = sphi 0, %s80
      %s98 = sphi 0, %s98
      %s100 = sphi 0, %s98
      %s101 = sphi 0, %s100
      %s115 = sphi 0, %s101
      %s119 = sphi 0, %s119
      %s121 = sphi 0, %s119
      %s122 = sphi 0, %s121
      %s136 = sphi 0, %s122
      %s140 = sphi 0, %s140
      %s142 = sphi 0, %s140
      %s143 = sphi 0, %s142
      %s157 = sphi 0, %s143
      %s161 = sphi 0, %s161
      %s163 = sphi 0, %s161
      %s164 = sphi 0, %s163
      %s178 = sphi 0, %s164
      %s182 = sphi 0, %s182
      %s184 = sphi 0, %s182
      %s185 = sphi 0, %s184
      %s199 = sphi 0, %s185
      %s203 = sphi 0, %s203
      %s205 = sphi 0, %s203
      %s206 = sphi 0, %s205
      %s220 = sphi 0, %s206
      %s224 = sphi 0, %s224
      %s226 = sphi 0, %s224
      %s227 = sphi 0, %s226
      %s241 = sphi 0, %s227
      %s249 = sphi 0, %s251
      %s252 = sphi 0, %s249
      %s253 = sphi 0, %s252
      %s269 = sphi 0, %s253
      %s277 = sphi 0, %s279
      %s280 = sphi 0, %s277
      %s281 = sphi 0, %s280
      %s297 = sphi 0, %s281
      %s305 = sphi 0, %s307
      %s308 = sphi 0, %s305
      %s309 = sphi 0, %s308
      %s325 = sphi 0, %s309
    $region4: #{tpu_custom_call.1} parent=1 // loop_header_branch
      %32 = sbr.rel (%p30) target = $region8
    $region5: #{tpu_custom_call.1} parent=1 // loop_body
      %s34 = ssub.s32 %s29, 1
      %s35 = ssub.s32 %s29, 2
      %s42 = sadd.s32 1, %s37
      %p43 = scmp.ge.s32.totalorder %s42, 1
      %s44 = scalar_select %p43, 0, %s42
      %s45 = sadd.s32 1, %s36
      %s46 = scalar_select %p43, %s45, %s36
      %p47 = scmp.ge.s32.totalorder %s46, 2
      %s48 = scalar_select %p47, 0, %s46
      %s49 = ssub.s32 %s36, %s48
      %s50 = ssub.s32 %s37, %s44
      %s51 = sor.u32 %s49, %s50
      %p52 = scmp.eq.s32.totalorder %s51, 0
      %s54 = sadd.s32 %s53, 1
      %s55 = scalar_select %p52, %s53, %s54
      %p58 = pneg %p52
      %p59 = scmp.eq.s32.totalorder %s29, 1
      %p60 = por %p58, %p59
      %p61 = scmp.ne.s32.totalorder %s53, %s56
      %p62 = scmp.eq.s32.totalorder %s29, 0
      %p63 = por %p61, %p62
      %p64 = scmp.ne.s32.totalorder %s53, %s56
      %p65 = scmp.eq.s32.totalorder %s34, 1
      %p66 = por %p64, %p65
      %p67 = scmp.ne.s32.totalorder %s56, %s57
      %p68 = scmp.eq.s32.totalorder %s34, 0
      %p69 = por %p67, %p68
      %p70 = scmp.ne.s32.totalorder %s56, %s57
      %p71 = scmp.eq.s32.totalorder %s35, 1
      %p72 = por %p70, %p71
      %p74 = scmp.ne.s32.totalorder %s57, %s73
      %p75 = scmp.eq.s32.totalorder %s35, 0
      %p76 = por %p74, %p75
      %s78 = sadd.s32 %s77, 1
      %p81 = scmp.eq.s32.totalorder %s29, 1
      %p82 = scmp.ne.s32.totalorder %s77, %s79
      %p83 = scmp.eq.s32.totalorder %s29, 0
      %p84 = por %p82, %p83
      %p85 = scmp.ne.s32.totalorder %s77, %s79
      %p86 = scmp.eq.s32.totalorder %s34, 1
      %p87 = por %p85, %p86
      %p88 = scmp.ne.s32.totalorder %s79, %s80
      %p89 = scmp.eq.s32.totalorder %s34, 0
      %p90 = por %p88, %p89
      %p91 = scmp.ne.s32.totalorder %s79, %s80
      %p92 = scmp.eq.s32.totalorder %s35, 1
      %p93 = por %p91, %p92
      %p95 = scmp.ne.s32.totalorder %s80, %s94
      %p96 = scmp.eq.s32.totalorder %s35, 0
      %p97 = por %p95, %p96
      %s99 = sadd.s32 %s98, 1
      %p102 = scmp.eq.s32.totalorder %s29, 1
      %p103 = scmp.ne.s32.totalorder %s98, %s100
      %p104 = scmp.eq.s32.totalorder %s29, 0
      %p105 = por %p103, %p104
      %p106 = scmp.ne.s32.totalorder %s98, %s100
      %p107 = scmp.eq.s32.totalorder %s34, 1
      %p108 = por %p106, %p107
      %p109 = scmp.ne.s32.totalorder %s100, %s101
      %p110 = scmp.eq.s32.totalorder %s34, 0
      %p111 = por %p109, %p110
      %p112 = scmp.ne.s32.totalorder %s100, %s101
      %p113 = scmp.eq.s32.totalorder %s35, 1
      %p114 = por %p112, %p113
      %p116 = scmp.ne.s32.totalorder %s101, %s115
      %p117 = scmp.eq.s32.totalorder %s35, 0
      %p118 = por %p116, %p117
      %s120 = sadd.s32 %s119, 1
      %p123 = scmp.eq.s32.totalorder %s29, 1
      %p124 = scmp.ne.s32.totalorder %s119, %s121
      %p125 = scmp.eq.s32.totalorder %s29, 0
      %p126 = por %p124, %p125
      %p127 = scmp.ne.s32.totalorder %s119, %s121
      %p128 = scmp.eq.s32.totalorder %s34, 1
      %p129 = por %p127, %p128
      %p130 = scmp.ne.s32.totalorder %s121, %s122
      %p131 = scmp.eq.s32.totalorder %s34, 0
      %p132 = por %p130, %p131
      %p133 = scmp.ne.s32.totalorder %s121, %s122
      %p134 = scmp.eq.s32.totalorder %s35, 1
      %p135 = por %p133, %p134
      %p137 = scmp.ne.s32.totalorder %s122, %s136
      %p138 = scmp.eq.s32.totalorder %s35, 0
      %p139 = por %p137, %p138
      %s141 = sadd.s32 %s140, 1
      %p144 = scmp.eq.s32.totalorder %s29, 1
      %p145 = scmp.ne.s32.totalorder %s140, %s142
      %p146 = scmp.eq.s32.totalorder %s29, 0
      %p147 = por %p145, %p146
      %p148 = scmp.ne.s32.totalorder %s140, %s142
      %p149 = scmp.eq.s32.totalorder %s34, 1
      %p150 = por %p148, %p149
      %p151 = scmp.ne.s32.totalorder %s142, %s143
      %p152 = scmp.eq.s32.totalorder %s34, 0
      %p153 = por %p151, %p152
      %p154 = scmp.ne.s32.totalorder %s142, %s143
      %p155 = scmp.eq.s32.totalorder %s35, 1
      %p156 = por %p154, %p155
      %p158 = scmp.ne.s32.totalorder %s143, %s157
      %p159 = scmp.eq.s32.totalorder %s35, 0
      %p160 = por %p158, %p159
      %s162 = sadd.s32 %s161, 1
      %p165 = scmp.eq.s32.totalorder %s29, 1
      %p166 = scmp.ne.s32.totalorder %s161, %s163
      %p167 = scmp.eq.s32.totalorder %s29, 0
      %p168 = por %p166, %p167
      %p169 = scmp.ne.s32.totalorder %s161, %s163
      %p170 = scmp.eq.s32.totalorder %s34, 1
      %p171 = por %p169, %p170
      %p172 = scmp.ne.s32.totalorder %s163, %s164
      %p173 = scmp.eq.s32.totalorder %s34, 0
      %p174 = por %p172, %p173
      %p175 = scmp.ne.s32.totalorder %s163, %s164
      %p176 = scmp.eq.s32.totalorder %s35, 1
      %p177 = por %p175, %p176
      %p179 = scmp.ne.s32.totalorder %s164, %s178
      %p180 = scmp.eq.s32.totalorder %s35, 0
      %p181 = por %p179, %p180
      %s183 = sadd.s32 %s182, 1
      %p186 = scmp.eq.s32.totalorder %s29, 1
      %p187 = scmp.ne.s32.totalorder %s182, %s184
      %p188 = scmp.eq.s32.totalorder %s29, 0
      %p189 = por %p187, %p188
      %p190 = scmp.ne.s32.totalorder %s182, %s184
      %p191 = scmp.eq.s32.totalorder %s34, 1
      %p192 = por %p190, %p191
      %p193 = scmp.ne.s32.totalorder %s184, %s185
      %p194 = scmp.eq.s32.totalorder %s34, 0
      %p195 = por %p193, %p194
      %p196 = scmp.ne.s32.totalorder %s184, %s185
      %p197 = scmp.eq.s32.totalorder %s35, 1
      %p198 = por %p196, %p197
      %p200 = scmp.ne.s32.totalorder %s185, %s199
      %p201 = scmp.eq.s32.totalorder %s35, 0
      %p202 = por %p200, %p201
      %s204 = sadd.s32 %s203, 1
      %p207 = scmp.eq.s32.totalorder %s29, 1
      %p208 = scmp.ne.s32.totalorder %s203, %s205
      %p209 = scmp.eq.s32.totalorder %s29, 0
      %p210 = por %p208, %p209
      %p211 = scmp.ne.s32.totalorder %s203, %s205
      %p212 = scmp.eq.s32.totalorder %s34, 1
      %p213 = por %p211, %p212
      %p214 = scmp.ne.s32.totalorder %s205, %s206
      %p215 = scmp.eq.s32.totalorder %s34, 0
      %p216 = por %p214, %p215
      %p217 = scmp.ne.s32.totalorder %s205, %s206
      %p218 = scmp.eq.s32.totalorder %s35, 1
      %p219 = por %p217, %p218
      %p221 = scmp.ne.s32.totalorder %s206, %s220
      %p222 = scmp.eq.s32.totalorder %s35, 0
      %p223 = por %p221, %p222
      %s225 = sadd.s32 %s224, 1
      %p228 = scmp.eq.s32.totalorder %s29, 1
      %p229 = scmp.ne.s32.totalorder %s224, %s226
      %p230 = scmp.eq.s32.totalorder %s29, 0
      %p231 = por %p229, %p230
      %p232 = scmp.ne.s32.totalorder %s224, %s226
      %p233 = scmp.eq.s32.totalorder %s34, 1
      %p234 = por %p232, %p233
      %p235 = scmp.ne.s32.totalorder %s226, %s227
      %p236 = scmp.eq.s32.totalorder %s34, 0
      %p237 = por %p235, %p236
      %p238 = scmp.ne.s32.totalorder %s226, %s227
      %p239 = scmp.eq.s32.totalorder %s35, 1
      %p240 = por %p238, %p239
      %p242 = scmp.ne.s32.totalorder %s227, %s241
      %p243 = scmp.eq.s32.totalorder %s35, 0
      %p244 = por %p242, %p243
      %s245 = ssub.s32 %s36, %s48
      %s246 = ssub.s32 %s37, %s44
      %s247 = sor.u32 %s245, %s246
      %p248 = scmp.eq.s32.totalorder %s247, 0
      %s250 = sadd.s32 %s249, 1
      %s251 = scalar_select %p248, %s249, %s250
      %p254 = pneg %p248
      %p255 = scmp.eq.s32.totalorder %s29, 1
      %p256 = por %p254, %p255
      %p257 = scmp.ne.s32.totalorder %s249, %s252
      %p258 = scmp.eq.s32.totalorder %s29, 0
      %p259 = por %p257, %p258
      %p260 = scmp.ne.s32.totalorder %s249, %s252
      %p261 = scmp.eq.s32.totalorder %s34, 1
      %p262 = por %p260, %p261
      %p263 = scmp.ne.s32.totalorder %s252, %s253
      %p264 = scmp.eq.s32.totalorder %s34, 0
      %p265 = por %p263, %p264
      %p266 = scmp.ne.s32.totalorder %s252, %s253
      %p267 = scmp.eq.s32.totalorder %s35, 1
      %p268 = por %p266, %p267
      %p270 = scmp.ne.s32.totalorder %s253, %s269
      %p271 = scmp.eq.s32.totalorder %s35, 0
      %p272 = por %p270, %p271
      %s273 = ssub.s32 %s36, %s48
      %s274 = ssub.s32 %s37, %s44
      %s275 = sor.u32 %s273, %s274
      %p276 = scmp.eq.s32.totalorder %s275, 0
      %s278 = sadd.s32 %s277, 1
      %s279 = scalar_select %p276, %s277, %s278
      %p282 = pneg %p276
      %p283 = scmp.eq.s32.totalorder %s29, 1
      %p284 = por %p282, %p283
      %p285 = scmp.ne.s32.totalorder %s277, %s280
      %p286 = scmp.eq.s32.totalorder %s29, 0
      %p287 = por %p285, %p286
      %p288 = scmp.ne.s32.totalorder %s277, %s280
      %p289 = scmp.eq.s32.totalorder %s34, 1
      %p290 = por %p288, %p289
      %p291 = scmp.ne.s32.totalorder %s280, %s281
      %p292 = scmp.eq.s32.totalorder %s34, 0
      %p293 = por %p291, %p292
      %p294 = scmp.ne.s32.totalorder %s280, %s281
      %p295 = scmp.eq.s32.totalorder %s35, 1
      %p296 = por %p294, %p295
      %p298 = scmp.ne.s32.totalorder %s281, %s297
      %p299 = scmp.eq.s32.totalorder %s35, 0
      %p300 = por %p298, %p299
      %s301 = ssub.s32 %s36, %s48
      %s302 = ssub.s32 %s37, %s44
      %s303 = sor.u32 %s301, %s302
      %p304 = scmp.eq.s32.totalorder %s303, 0
      %s306 = sadd.s32 %s305, 1
      %s307 = scalar_select %p304, %s305, %s306
      %p310 = pneg %p304
      %p311 = scmp.eq.s32.totalorder %s29, 1
      %p312 = por %p310, %p311
      %p313 = scmp.ne.s32.totalorder %s305, %s308
      %p314 = scmp.eq.s32.totalorder %s29, 0
      %p315 = por %p313, %p314
      %p316 = scmp.ne.s32.totalorder %s305, %s308
      %p317 = scmp.eq.s32.totalorder %s34, 1
      %p318 = por %p316, %p317
      %p319 = scmp.ne.s32.totalorder %s308, %s309
      %p320 = scmp.eq.s32.totalorder %s34, 0
      %p321 = por %p319, %p320
      %p322 = scmp.ne.s32.totalorder %s308, %s309
      %p323 = scmp.eq.s32.totalorder %s35, 1
      %p324 = por %p322, %p323
      %p326 = scmp.ne.s32.totalorder %s309, %s325
      %p327 = scmp.eq.s32.totalorder %s35, 0
      %p328 = por %p326, %p327
      %p329 = scmp.le.s32.totalorder 1, %s29
      %p330 = scmp.lt.s32.totalorder %s29, 3
      %p331 = pnand %p329, %p330
      %p332 = pneg %p331
      // Predicated region
      $region9: #{tpu_custom_call.1} parent=5 // pred_check
        _
      $region10: #{tpu_custom_call.1} parent=5 // pred_check_branch
        %334 = sbr.rel (%p331) target = $region12
      $region11: #{tpu_custom_call.1} parent=5 // pred_region
        %s335 = ssub.s32 %s29, 1
        // Predicated region
        $region13: #{tpu_custom_call.1} parent=11 // pred_check
          %p336 = pneg %p90
        $region14: #{tpu_custom_call.1} parent=11 // pred_check_branch
          %338 = sbr.rel (%p336) target = $region16
        $region15: #{tpu_custom_call.1} parent=11 // pred_region
          _
        $region16: #{tpu_custom_call.1} parent=11 // pred_fallthru
          _
        // Predicated region
        $region17: #{tpu_custom_call.1} parent=11 // pred_check
          %p339 = pneg %p111
        $region18: #{tpu_custom_call.1} parent=11 // pred_check_branch
          %341 = sbr.rel (%p339) target = $region20
        $region19: #{tpu_custom_call.1} parent=11 // pred_region
          _
        $region20: #{tpu_custom_call.1} parent=11 // pred_fallthru
          _
        // Predicated region
        $region21: #{tpu_custom_call.1} parent=11 // pred_check
          %p342 = pneg %p132
        $region22: #{tpu_custom_call.1} parent=11 // pred_check_branch
          %344 = sbr.rel (%p342) target = $region24
        $region23: #{tpu_custom_call.1} parent=11 // pred_region
          %s346 = ssub.s32 256, 256
          %347 = vsyncadd [#allocation6], %s346
          %s348 = sshll.u32 [#allocation5], 4
          %s349 = int_to_ptr.vmem [resolvable:$true] %s348
          %354 = dma.hbm_to_vmem [thread:$0]  %s3, 256, %s349, [#allocation6], 64, 64, 4
        $region24: #{tpu_custom_call.1} parent=11 // pred_fallthru
          _
        // Predicated region
        $region25: #{tpu_custom_call.1} parent=11 // pred_check
          %p355 = pneg %p153
        $region26: #{tpu_custom_call.1} parent=11 // pred_check_branch
          %357 = sbr.rel (%p355) target = $region28
        $region27: #{tpu_custom_call.1} parent=11 // pred_region
          %s359 = ssub.s32 16, 16
          %360 = vsyncadd [#allocation6], %s359
          %s362 = sshll.u32 [#allocation7], 4
          %s363 = int_to_ptr.vmem [resolvable:$true] %s362
          %365 = dma.hbm_to_vmem [thread:$0]  %s4, 16, %s363, [#allocation6]
        $region28: #{tpu_custom_call.1} parent=11 // pred_fallthru
          _
        // Predicated region
        $region29: #{tpu_custom_call.1} parent=11 // pred_check
          %p366 = pneg %p174
        $region30: #{tpu_custom_call.1} parent=11 // pred_check_branch
          %368 = sbr.rel (%p366) target = $region32
        $region31: #{tpu_custom_call.1} parent=11 // pred_region
          _
        $region32: #{tpu_custom_call.1} parent=11 // pred_fallthru
          _
        // Predicated region
        $region33: #{tpu_custom_call.1} parent=11 // pred_check
          %p369 = pneg %p195
        $region34: #{tpu_custom_call.1} parent=11 // pred_check_branch
          %371 = sbr.rel (%p369) target = $region36
        $region35: #{tpu_custom_call.1} parent=11 // pred_region
          _
        $region36: #{tpu_custom_call.1} parent=11 // pred_fallthru
          _
        // Predicated region
        $region37: #{tpu_custom_call.1} parent=11 // pred_check
          %p372 = pneg %p216
        $region38: #{tpu_custom_call.1} parent=11 // pred_check_branch
          %374 = sbr.rel (%p372) target = $region40
        $region39: #{tpu_custom_call.1} parent=11 // pred_region
          %s376 = ssub.s32 256, 256
          %377 = vsyncadd [#allocation9], %s376
          %s378 = sshll.u32 [#allocation8], 4
          %s379 = int_to_ptr.vmem [resolvable:$true] %s378
          %384 = dma.hbm_to_vmem [thread:$0]  %s7, 256, %s379, [#allocation9], 64, 64, 4
        $region40: #{tpu_custom_call.1} parent=11 // pred_fallthru
          _
        // Predicated region
        $region41: #{tpu_custom_call.1} parent=11 // pred_check
          %p385 = pneg %p237
        $region42: #{tpu_custom_call.1} parent=11 // pred_check_branch
          %387 = sbr.rel (%p385) target = $region44
        $region43: #{tpu_custom_call.1} parent=11 // pred_region
          _
        $region44: #{tpu_custom_call.1} parent=11 // pred_fallthru
          _
      $region12: #{tpu_custom_call.1} parent=5 // pred_fallthru
        _
      %p388 = scmp.lt.s32.totalorder %s29, 2
      // Predicated region
      $region45: #{tpu_custom_call.1} parent=5 // pred_check
        %p389 = pneg %p388
      $region46: #{tpu_custom_call.1} parent=5 // pred_check_branch
        %391 = sbr.rel (%p389) target = $region48
      $region47: #{tpu_custom_call.1} parent=5 // pred_region
        // Predicated region
        $region49: #{tpu_custom_call.1} parent=47 // pred_check
          %p392 = pneg %p63
        $region50: #{tpu_custom_call.1} parent=47 // pred_check_branch
          %394 = sbr.rel (%p392) target = $region52
        $region51: #{tpu_custom_call.1} parent=47 // pred_region
          %s395 = sand.u32 %s53, 1
          %s396 = scalar_lea.sflag [#allocation3], %s395
          %s397 = sand.u32 %s53, 1
          %s398 = smul.addr %s397, 4
          %s399 = scalar_lea.vmem [#allocation2], %s398
          %s401 = ssub.s32 64, 64
          %402 = vsyncadd %s396, %s401
          %s403 = sadd.s32 %s37, %s36
          %s404 = smul.addr %s403, 64
          %s405 = scalar_lea.hbm %s0, %s404
          %s407 = sshll.u32 %s399, 4
          %s408 = int_to_ptr.vmem [resolvable:$true] %s407
          %410 = dma.hbm_to_vmem [thread:$0]  %s405, 64, %s408, %s396
        $region52: #{tpu_custom_call.1} parent=47 // pred_fallthru
          _
      $region48: #{tpu_custom_call.1} parent=5 // pred_fallthru
        _
      %p411 = scmp.le.s32.totalorder 1, %s29
      %p412 = scmp.lt.s32.totalorder %s29, 3
      %p413 = pnand %p411, %p412
      %p414 = pneg %p413
      // Predicated region
      $region53: #{tpu_custom_call.1} parent=5 // pred_check
        _
      $region54: #{tpu_custom_call.1} parent=5 // pred_check_branch
        %416 = sbr.rel (%p413) target = $region56
      $region55: #{tpu_custom_call.1} parent=5 // pred_region
        %s417 = ssub.s32 %s29, 1
        %s418 = sand.u32 %s56, 1
        %s419 = scalar_lea.sflag [#allocation3], %s418
        %s420 = sand.u32 %s56, 1
        %s421 = smul.addr %s420, 4
        %s422 = scalar_lea.vmem [#allocation2], %s421
        // Predicated region
        $region57: #{tpu_custom_call.1} parent=55 // pred_check
          %p423 = pneg %p69
        $region58: #{tpu_custom_call.1} parent=55 // pred_check_branch
          %425 = sbr.rel (%p423) target = $region60
        $region59: #{tpu_custom_call.1} parent=55 // pred_region
          %426 = dma.done %s419, 64
        $region60: #{tpu_custom_call.1} parent=55 // pred_fallthru
          _
        // Predicated region
        $region61: #{tpu_custom_call.1} parent=55 // pred_check
          %p427 = pneg %p132
        $region62: #{tpu_custom_call.1} parent=55 // pred_check_branch
          %429 = sbr.rel (%p427) target = $region64
        $region63: #{tpu_custom_call.1} parent=55 // pred_region
          %430 = dma.done [#allocation6], 256
        $region64: #{tpu_custom_call.1} parent=55 // pred_fallthru
          _
        // Predicated region
        $region65: #{tpu_custom_call.1} parent=55 // pred_check
          %p431 = pneg %p153
        $region66: #{tpu_custom_call.1} parent=55 // pred_check_branch
          %433 = sbr.rel (%p431) target = $region68
        $region67: #{tpu_custom_call.1} parent=55 // pred_region
          %434 = dma.done [#allocation6], 16
        $region68: #{tpu_custom_call.1} parent=55 // pred_fallthru
          _
        // Predicated region
        $region69: #{tpu_custom_call.1} parent=55 // pred_check
          %p435 = pneg %p216
        $region70: #{tpu_custom_call.1} parent=55 // pred_check_branch
          %437 = sbr.rel (%p435) target = $region72
        $region71: #{tpu_custom_call.1} parent=55 // pred_region
          %438 = dma.done [#allocation9], 256
        $region72: #{tpu_custom_call.1} parent=55 // pred_fallthru
          _
        %s439 = sand.u32 %s56, 1
        %s440 = scalar_lea.sflag [#allocation3], %s439
        %s441 = sand.u32 %s56, 1
        %s442 = smul.addr %s441, 4
        %s443 = scalar_lea.vmem [#allocation2], %s442
        %p444 = pneg %p69
        %p445 = pneg %p66
        %p446 = pneg %p90
        %p447 = pneg %p87
        %p448 = pneg %p111
        %p449 = pneg %p108
        %p450 = pneg %p132
        %p451 = pneg %p129
        %p452 = pneg %p153
        %p453 = pneg %p150
        %p454 = pneg %p174
        %p455 = pneg %p171
        %p456 = pneg %p195
        %p457 = pneg %p192
        %p458 = pneg %p216
        %p459 = pneg %p213
        %p460 = pneg %p237
        %p461 = pneg %p234
        %p462 = pneg %p265
        %p463 = pneg %p262
        %s464 = sand.u32 %s252, 1
        %s465 = scalar_lea.sflag [#allocation4], %s464
        %s466 = sand.u32 %s252, 1
        %s467 = smul.addr %s466, 16
        %s468 = scalar_lea.vmem [#allocation10], %s467
        %p469 = pneg %p293
        %p470 = pneg %p290
        %s471 = sand.u32 %s34, 1
        %s472 = scalar_lea.sflag [#allocation12], %s471
        %s473 = sand.u32 %s280, 1
        %s474 = smul.addr %s473, 16
        %s475 = scalar_lea.vmem [#allocation11], %s474
        %p476 = pneg %p321
        %p477 = pneg %p318
        %s478 = sand.u32 %s34, 1
        %s479 = scalar_lea.sflag [#allocation12], %s478
        %s480 = sand.u32 %s308, 1
        %s481 = smul.addr %s480, 16
        %s482 = scalar_lea.vmem [#allocation13], %s481
        %v484 = vld [vmem:[%s422] sm:$0xf]
        %v485 = vunpack.c.l.bf16 %v484
        %v486 = vld [vmem:[%s1] sm:$0x1]
        %v487 = vld [vmem:[%s2] sm:$0x1]
        %v488 = vunpack.c.l.bf16 %v486
        %v489 = vunpack.c.l.bf16 %v487
        %vm490 = vcmask 261120
        %v491 = vsel %vm490, %v485, 0.0
        %492 = vadd.xlane.f32.xlu0 %v491
        %v493 = vpop.xlane.xlu0 %492
        %v494 = vrcp.pop 32.0
        %v495 = vmul.f32 %v493, %v494
        %v496 = vsub.f32 %v485, %v495
        %v497 = vmul.f32 %v496, %v496
        %v498 = vsel %vm490, %v497, 0.0
        %499 = vadd.xlane.f32.xlu0 %v498
        %v500 = vpop.xlane.xlu0 %499
        %v501 = vmul.f32 %v500, %v494
        %v502 = vadd.f32 %v501, 1e-05
        %v503 = vrsqrt.pop %v502
        %v504 = vmul.f32 %v496, %v503
        %v505 = vlaneseq
        %v506 = vshrl.u32 %v505, 7
        %v507 = vsub.s32 0, %v506
        %v508 = vrot.slane %v488, %v507
        %v509 = vmul.f32 %v504, %v508
        %v510 = vlaneseq
        %v511 = vshrl.u32 %v510, 7
        %v512 = vsub.s32 0, %v511
        %v513 = vrot.slane %v489, %v512
        %v514 = vadd.f32 %v509, %v513
        %v515 = vpack.c.bf16 %v514, %v514
        %v516 = vld [vmem:[#allocation5] sm:$0xf]
        %v517 = vld [vmem:[#allocation5 + $0x4] sm:$0xf]
        %v518 = vld [vmem:[#allocation5 + $0x8] sm:$0xf]
        %v519 = vld [vmem:[#allocation5 + $0xc] sm:$0xf]
        %v520 = vld [vmem:[#allocation7] sm:$0x1]
        %v521 = vunpack.c.l.bf16 %v520
        %v522 = vlaneseq
        %v523 = vshrl.u32 %v522, 7
        %v524 = vsub.s32 0, %v523
        %v525 = vrot.slane %v521, %v524
        %v530 = vunpack.c.l.b16 %v516
        %v531 = vunpack.c.l.b16 %v517
        %v532 = vunpack.c.l.b16 %v518
        %v533 = vunpack.c.l.b16 %v519
        %v534 = vpack.c.b16 %v531, %v530
        %v535 = vpack.c.b16 %v533, %v532
        %v539 = vsel %vm490, %v515, 0
        %541 = vmatprep.subr.bf16.mxu0 0
        %542 = vmatpush1.bf16.msra.mxu0 %v534
        %543 = vmatprep.subr.bf16.mxu0 0
        %544 = vmatpush1.bf16.msra.mxu0 %v535
        %545 = vmatprep.subr.bf16.mxu0 0
        %546 = vmatpush1.bf16.msra.mxu0 0
        %547 = vmatprep.subr.bf16.mxu0 0
        %548 = vmatpush1.bf16.msra.mxu0 0
        %549 = vmatprep.subr.bf16.mxu0 0
        %550 = vmatpush1.bf16.msra.mxu0 0
        %551 = vmatprep.subr.bf16.mxu0 0
        %552 = vmatpush1.bf16.msra.mxu0 0
        %553 = vmatprep.subr.bf16.mxu0 0
        %554 = vmatpush1.bf16.msra.mxu0 0
        %555 = vmatprep.subr.bf16.mxu0 0
        %556 = vmatpush1.bf16.msra.mxu0 0
        %557 = vmatprep.subr.bf16.mxu0 0
        %558 = vmatpush1.bf16.msra.mxu0 0
        %559 = vmatprep.subr.bf16.mxu0 0
        %560 = vmatpush1.bf16.msra.mxu0 0
        %561 = vmatprep.subr.bf16.mxu0 0
        %562 = vmatpush1.bf16.msra.mxu0 0
        %563 = vmatprep.subr.bf16.mxu0 0
        %564 = vmatpush1.bf16.msra.mxu0 0
        %565 = vmatprep.subr.bf16.mxu0 0
        %566 = vmatpush1.bf16.msra.mxu0 0
        %567 = vmatprep.subr.bf16.mxu0 0
        %568 = vmatpush1.bf16.msra.mxu0 0
        %569 = vmatprep.subr.bf16.mxu0 0
        %570 = vmatpush1.bf16.msra.mxu0 0
        %571 = vmatprep.subr.bf16.mxu0 0
        %572 = vmatpush1.bf16.msra.mxu0 0
        %573 = vmatprep.mubr.bf16.mxu0 0
        %574 = vmatmul.mubr.bf16.gmra.mrb[0].mxu0 %v539
        %v575 = vpop.f32.mrb[0].mxu0
        %v576 = vadd.f32 %v525, %v575
        %v577 = vpop.f32.mrb[0].mxu0
        %v578 = vpop.f32.mrb[0].mxu0
        %v579 = vpop.f32.mrb[0].mxu0
        %580 = vdwg.mxu0
        %v581 = vmul.f32 %v576, 0.35355338
        %v582 = vld [vmem:[%s5] sm:$0xf]
        %v583 = vld [vmem:[%s5 + $0x4] sm:$0xf]
        %v584 = vld [vmem:[%s5 + $0x8] sm:$0xf]
        %v585 = vld [vmem:[%s5 + $0xc] sm:$0xf]
        %v586 = vld [vmem:[%s6] sm:$0x1]
        %v587 = vunpack.c.l.bf16 %v586
        %v588 = vlaneseq
        %v589 = vshrl.u32 %v588, 7
        %v590 = vsub.s32 0, %v589
        %v591 = vrot.slane %v587, %v590
        %v596 = vunpack.c.l.b16 %v582
        %v597 = vunpack.c.l.b16 %v583
        %v598 = vunpack.c.l.b16 %v584
        %v599 = vunpack.c.l.b16 %v585
        %v600 = vpack.c.b16 %v597, %v596
        %v601 = vpack.c.b16 %v599, %v598
        %604 = vmatprep.subr.bf16.mxu0 0
        %605 = vmatpush1.bf16.msra.mxu0 %v600
        %606 = vmatprep.subr.bf16.mxu0 0
        %607 = vmatpush1.bf16.msra.mxu0 %v601
        %608 = vmatprep.subr.bf16.mxu0 0
        %609 = vmatpush1.bf16.msra.mxu0 0
        %610 = vmatprep.subr.bf16.mxu0 0
        %611 = vmatpush1.bf16.msra.mxu0 0
        %612 = vmatprep.subr.bf16.mxu0 0
        %613 = vmatpush1.bf16.msra.mxu0 0
        %614 = vmatprep.subr.bf16.mxu0 0
        %615 = vmatpush1.bf16.msra.mxu0 0
        %616 = vmatprep.subr.bf16.mxu0 0
        %617 = vmatpush1.bf16.msra.mxu0 0
        %618 = vmatprep.subr.bf16.mxu0 0
        %619 = vmatpush1.bf16.msra.mxu0 0
        %620 = vmatprep.subr.bf16.mxu0 0
        %621 = vmatpush1.bf16.msra.mxu0 0
        %622 = vmatprep.subr.bf16.mxu0 0
        %623 = vmatpush1.bf16.msra.mxu0 0
        %624 = vmatprep.subr.bf16.mxu0 0
        %625 = vmatpush1.bf16.msra.mxu0 0
        %626 = vmatprep.subr.bf16.mxu0 0
        %627 = vmatpush1.bf16.msra.mxu0 0
        %628 = vmatprep.subr.bf16.mxu0 0
        %629 = vmatpush1.bf16.msra.mxu0 0
        %630 = vmatprep.subr.bf16.mxu0 0
        %631 = vmatpush1.bf16.msra.mxu0 0
        %632 = vmatprep.subr.bf16.mxu0 0
        %633 = vmatpush1.bf16.msra.mxu0 0
        %634 = vmatprep.subr.bf16.mxu0 0
        %635 = vmatpush1.bf16.msra.mxu0 0
        %636 = vmatprep.mubr.bf16.mxu0 0
        %637 = vmatmul.mubr.bf16.gmra.mrb[0].mxu0 %v539
        %v638 = vpop.f32.mrb[0].mxu0
        %v639 = vadd.f32 %v591, %v638
        %v640 = vpop.f32.mrb[0].mxu0
        %v641 = vpop.f32.mrb[0].mxu0
        %v642 = vpop.f32.mrb[0].mxu0
        %643 = vdwg.mxu0
        %v644 = vld [vmem:[#allocation8] sm:$0xf]
        %v645 = vld [vmem:[#allocation8 + $0x4] sm:$0xf]
        %v646 = vld [vmem:[#allocation8 + $0x8] sm:$0xf]
        %v647 = vld [vmem:[#allocation8 + $0xc] sm:$0xf]
        %v648 = vld [vmem:[%s8] sm:$0x1]
        %v649 = vunpack.c.l.bf16 %v648
        %v650 = vlaneseq
        %v651 = vshrl.u32 %v650, 7
        %v652 = vsub.s32 0, %v651
        %v653 = vrot.slane %v649, %v652
        %v658 = vunpack.c.l.b16 %v644
        %v659 = vunpack.c.l.b16 %v645
        %v660 = vunpack.c.l.b16 %v646
        %v661 = vunpack.c.l.b16 %v647
        %v662 = vpack.c.b16 %v659, %v658
        %v663 = vpack.c.b16 %v661, %v660
        %666 = vmatprep.subr.bf16.mxu0 0
        %667 = vmatpush1.bf16.msra.mxu0 %v662
        %668 = vmatprep.subr.bf16.mxu0 0
        %669 = vmatpush1.bf16.msra.mxu0 %v663
        %670 = vmatprep.subr.bf16.mxu0 0
        %671 = vmatpush1.bf16.msra.mxu0 0
        %672 = vmatprep.subr.bf16.mxu0 0
        %673 = vmatpush1.bf16.msra.mxu0 0
        %674 = vmatprep.subr.bf16.mxu0 0
        %675 = vmatpush1.bf16.msra.mxu0 0
        %676 = vmatprep.subr.bf16.mxu0 0
        %677 = vmatpush1.bf16.msra.mxu0 0
        %678 = vmatprep.subr.bf16.mxu0 0
        %679 = vmatpush1.bf16.msra.mxu0 0
        %680 = vmatprep.subr.bf16.mxu0 0
        %681 = vmatpush1.bf16.msra.mxu0 0
        %682 = vmatprep.subr.bf16.mxu0 0
        %683 = vmatpush1.bf16.msra.mxu0 0
        %684 = vmatprep.subr.bf16.mxu0 0
        %685 = vmatpush1.bf16.msra.mxu0 0
        %686 = vmatprep.subr.bf16.mxu0 0
        %687 = vmatpush1.bf16.msra.mxu0 0
        %688 = vmatprep.subr.bf16.mxu0 0
        %689 = vmatpush1.bf16.msra.mxu0 0
        %690 = vmatprep.subr.bf16.mxu0 0
        %691 = vmatpush1.bf16.msra.mxu0 0
        %692 = vmatprep.subr.bf16.mxu0 0
        %693 = vmatpush1.bf16.msra.mxu0 0
        %694 = vmatprep.subr.bf16.mxu0 0
        %695 = vmatpush1.bf16.msra.mxu0 0
        %696 = vmatprep.subr.bf16.mxu0 0
        %697 = vmatpush1.bf16.msra.mxu0 0
        %698 = vmatprep.mubr.bf16.mxu0 0
        %699 = vmatmul.mubr.bf16.gmra.mrb[0].mxu0 %v539
        %v700 = vpop.f32.mrb[0].mxu0
        %v701 = vadd.f32 %v653, %v700
        %v702 = vpop.f32.mrb[0].mxu0
        %v703 = vpop.f32.mrb[0].mxu0
        %v704 = vpop.f32.mrb[0].mxu0
        %705 = vdwg.mxu0
        %v706 = vpack.c.bf16 %v581, %v581
        %vm707 = vcmask 60416
        %708 = vst.msk [vmem:[%s468] sm:$0xf] %vm707, %v706
        %v709 = vpack.c.bf16 %v639, %v639
        %710 = vst.msk [vmem:[%s475] sm:$0xf] %vm707, %v709
        %v711 = vpack.c.bf16 %v701, %v701
        %712 = vst.msk [vmem:[%s482] sm:$0xf] %vm707, %v711
        %v714 = vunpack.c.l.b16 %v706
        %v715 = vpack.c.b16 %v714, %v714
        %716 = vrot.lane.b32.xlu0 %v715, 120
        %v717 = vpop.permute.xlu0 %716
        %s719 = scalar_lea.vmem %s468, 4 [#allocation10]
        %720 = vst.msk [vmem:[%s719] sm:$0xf] %vm707, %v717
        %v722 = vunpack.c.l.b16 %v709
        %v723 = vpack.c.b16 %v722, %v722
        %724 = vrot.lane.b32.xlu0 %v723, 120
        %v725 = vpop.permute.xlu0 %724
        %s727 = scalar_lea.vmem %s475, 4 [#allocation11]
        %728 = vst.msk [vmem:[%s727] sm:$0xf] %vm707, %v725
        %v730 = vunpack.c.l.b16 %v711
        %v731 = vpack.c.b16 %v730, %v730
        %732 = vrot.lane.b32.xlu0 %v731, 120
        %v733 = vpop.permute.xlu0 %732
        %s735 = scalar_lea.vmem %s482, 4 [#allocation13]
        %736 = vst.msk [vmem:[%s735] sm:$0xf] %vm707, %v733
        %737 = vrot.lane.b32.xlu0 %v715, 112
        %v738 = vpop.permute.xlu0 %737
        %s740 = scalar_lea.vmem %s468, 8 [#allocation10]
        %741 = vst.msk [vmem:[%s740] sm:$0xf] %vm707, %v738
        %742 = vrot.lane.b32.xlu0 %v723, 112
        %v743 = vpop.permute.xlu0 %742
        %s745 = scalar_lea.vmem %s475, 8 [#allocation11]
        %746 = vst.msk [vmem:[%s745] sm:$0xf] %vm707, %v743
        %747 = vrot.lane.b32.xlu0 %v731, 112
        %v748 = vpop.permute.xlu0 %747
        %s750 = scalar_lea.vmem %s482, 8 [#allocation13]
        %751 = vst.msk [vmem:[%s750] sm:$0xf] %vm707, %v748
        %752 = vrot.lane.b32.xlu0 %v715, 104
        %v753 = vpop.permute.xlu0 %752
        %s755 = scalar_lea.vmem %s468, 12 [#allocation10]
        %756 = vst.msk [vmem:[%s755] sm:$0xf] %vm707, %v753
        %757 = vrot.lane.b32.xlu0 %v723, 104
        %v758 = vpop.permute.xlu0 %757
        %s760 = scalar_lea.vmem %s475, 12 [#allocation11]
        %761 = vst.msk [vmem:[%s760] sm:$0xf] %vm707, %v758
        %762 = vrot.lane.b32.xlu0 %v731, 104
        %v763 = vpop.permute.xlu0 %762
        %s765 = scalar_lea.vmem %s482, 12 [#allocation13]
        %766 = vst.msk [vmem:[%s765] sm:$0xf] %vm707, %v763
        %s767 = sand.u32 %s252, 1
        %s768 = scalar_lea.sflag [#allocation4], %s767
        %s769 = sand.u32 %s252, 1
        %s770 = smul.addr %s769, 16
        %s771 = scalar_lea.vmem [#allocation10], %s770
        %s772 = sand.u32 %s34, 1
        %s773 = scalar_lea.sflag [#allocation12], %s772
        %s774 = sand.u32 %s280, 1
        %s775 = smul.addr %s774, 16
        %s776 = scalar_lea.vmem [#allocation11], %s775
        %s777 = sand.u32 %s34, 1
        %s778 = scalar_lea.sflag [#allocation12], %s777
        %s779 = sand.u32 %s308, 1
        %s780 = smul.addr %s779, 16
        %s781 = scalar_lea.vmem [#allocation13], %s780
        // Predicated region
        $region73: #{tpu_custom_call.1} parent=55 // pred_check
          %p782 = pneg %p262
        $region74: #{tpu_custom_call.1} parent=55 // pred_check_branch
          %784 = sbr.rel (%p782) target = $region76
        $region75: #{tpu_custom_call.1} parent=55 // pred_region
          %s786 = ssub.s32 256, 256
          %787 = vsyncadd %s768, %s786
          %s788 = smul.addr %s38, 4
          %s789 = sadd.s32 %s39, %s788
          %s790 = smul.addr %s789, 64
          %s791 = scalar_lea.hbm %s9, %s790
          %s792 = sshll.u32 %s771, 4
          %s793 = int_to_ptr.vmem [resolvable:$true] %s792
          %798 = dma.vmem_to_hbm [thread:$0]  %s793, 256, %s791, %s768, 64, 64, 4
        $region76: #{tpu_custom_call.1} parent=55 // pred_fallthru
          _
        // Predicated region
        $region77: #{tpu_custom_call.1} parent=55 // pred_check
          %p799 = pneg %p290
        $region78: #{tpu_custom_call.1} parent=55 // pred_check_branch
          %801 = sbr.rel (%p799) target = $region80
        $region79: #{tpu_custom_call.1} parent=55 // pred_region
          %s803 = ssub.s32 256, 256
          %804 = vsyncadd %s773, %s803
          %s805 = smul.addr %s38, 4
          %s806 = sadd.s32 %s39, %s805
          %s807 = smul.addr %s806, 64
          %s808 = scalar_lea.hbm %s10, %s807
          %s809 = sshll.u32 %s776, 4
          %s810 = int_to_ptr.vmem [resolvable:$true] %s809
          %815 = dma.vmem_to_hbm [thread:$0]  %s810, 256, %s808, %s773, 64, 64, 4
        $region80: #{tpu_custom_call.1} parent=55 // pred_fallthru
          _
        // Predicated region
        $region81: #{tpu_custom_call.1} parent=55 // pred_check
          %p816 = pneg %p318
        $region82: #{tpu_custom_call.1} parent=55 // pred_check_branch
          %818 = sbr.rel (%p816) target = $region84
        $region83: #{tpu_custom_call.1} parent=55 // pred_region
          %s820 = ssub.s32 256, 256
          %821 = vsyncadd %s778, %s820
          %s822 = smul.addr %s38, 4
          %s823 = sadd.s32 %s39, %s822
          %s824 = smul.addr %s823, 64
          %s825 = scalar_lea.hbm %s11, %s824
          %s826 = sshll.u32 %s781, 4
          %s827 = int_to_ptr.vmem [resolvable:$true] %s826
          %832 = dma.vmem_to_hbm [thread:$0]  %s827, 256, %s825, %s778, 64, 64, 4
        $region84: #{tpu_custom_call.1} parent=55 // pred_fallthru
          _
      $region56: #{tpu_custom_call.1} parent=5 // pred_fallthru
        _
      %p833 = scmp.le.s32.totalorder 2, %s29
      // Predicated region
      $region85: #{tpu_custom_call.1} parent=5 // pred_check
        %p834 = pneg %p833
      $region86: #{tpu_custom_call.1} parent=5 // pred_check_branch
        %836 = sbr.rel (%p834) target = $region88
      $region87: #{tpu_custom_call.1} parent=5 // pred_region
        %s837 = ssub.s32 %s29, 2
        // Predicated region
        $region89: #{tpu_custom_call.1} parent=87 // pred_check
          %p838 = pneg %p268
        $region90: #{tpu_custom_call.1} parent=87 // pred_check_branch
          %840 = sbr.rel (%p838) target = $region92
        $region91: #{tpu_custom_call.1} parent=87 // pred_region
          %s841 = sand.u32 %s253, 1
          %s842 = scalar_lea.sflag [#allocation4], %s841
          %s843 = sand.u32 %s253, 1
          %s844 = smul.addr %s843, 16
          %s845 = scalar_lea.vmem [#allocation10], %s844
          %846 = dma.done %s842, 256
        $region92: #{tpu_custom_call.1} parent=87 // pred_fallthru
          _
        // Predicated region
        $region93: #{tpu_custom_call.1} parent=87 // pred_check
          %p847 = pneg %p296
        $region94: #{tpu_custom_call.1} parent=87 // pred_check_branch
          %849 = sbr.rel (%p847) target = $region96
        $region95: #{tpu_custom_call.1} parent=87 // pred_region
          %s850 = sand.u32 %s35, 1
          %s851 = scalar_lea.sflag [#allocation12], %s850
          %s852 = sand.u32 %s281, 1
          %s853 = smul.addr %s852, 16
          %s854 = scalar_lea.vmem [#allocation11], %s853
          %855 = dma.done %s851, 256
        $region96: #{tpu_custom_call.1} parent=87 // pred_fallthru
          _
        // Predicated region
        $region97: #{tpu_custom_call.1} parent=87 // pred_check
          %p856 = pneg %p324
        $region98: #{tpu_custom_call.1} parent=87 // pred_check_branch
          %858 = sbr.rel (%p856) target = $region100
        $region99: #{tpu_custom_call.1} parent=87 // pred_region
          %s859 = sand.u32 %s35, 1
          %s860 = scalar_lea.sflag [#allocation12], %s859
          %s861 = sand.u32 %s309, 1
          %s862 = smul.addr %s861, 16
          %s863 = scalar_lea.vmem [#allocation13], %s862
          %864 = dma.done %s860, 256
        $region100: #{tpu_custom_call.1} parent=87 // pred_fallthru
          _
      $region88: #{tpu_custom_call.1} parent=5 // pred_fallthru
        _
    $region6: #{tpu_custom_call.1} parent=1 // loop_footer
      %s33 = sadd.s32 1, %s29
    $region7: #{tpu_custom_call.1} parent=1 // loop_footer_branch
      %28 = sbr.rel target = $region3
    $region8: #{tpu_custom_call.1} parent=1 // loop_exit
      _
    %865 = vsyncpa [#allocation3], 1
    %s866 = scalar_lea.sflag [#allocation3], 1
    %867 = vsyncpa %s866, 1
    %868 = vsyncpa [#allocation6], 1
    %869 = vsyncpa [#allocation9], 1
    %870 = vsyncpa [#allocation4], 1
    %s871 = scalar_lea.sflag [#allocation4], 1
    %872 = vsyncpa %s871, 1
    %873 = vsyncpa [#allocation12], 1
    %s874 = scalar_lea.sflag [#allocation12], 1
    %875 = vsyncpa %s874, 1

</llo_original>
